<compile_context>
chip_gen: v7x
topology: tpu7x:2x2x1
jax: 0.10.0
libtpu: 0.0.40
codegen_flags: <defaults>
</compile_context>

<pallas_src>
import jax
import jax.numpy as jnp
from jax.experimental import pallas as pl
from jax.experimental.pallas import tpu as pltpu

HIDDEN = 32  # fixed by TNet's nn.Linear(k, 32)


def pc_encoder_kernel(x_ref, valid_ref, w1_ref, b1_ref, w2_ref, b2_ref,
                      wbig_ref, beff_ref, bc_ref, out_ref):
    x = x_ref[...]                                   # (TB, N, K) f32
    tb, n, k = x.shape
    out_size = w2_ref.shape[-1]

    # ---- TNet MLP layer 1: Linear(K, 32) + ReLU (depth-K contraction on MXU).
    x2 = x.reshape(tb * n, k)                        # leading-dim collapse: free
    h = jnp.dot(x2, w1_ref[...], preferred_element_type=jnp.float32) + b1_ref[...]
    h = jnp.maximum(h, 0.0)                          # (TB*N, 32)

    # ---- TNet MLP layer 2: Linear(32, OUT) + ReLU (MXU).
    h = jnp.dot(h, w2_ref[...], preferred_element_type=jnp.float32) + b2_ref[...]
    h = jnp.maximum(h, 0.0)                          # (TB*N, OUT)

    # ---- per-cloud max pool over the N points (layout-preserving when N%8==0).
    pooled = jnp.max(h.reshape(tb, n, out_size), axis=1)           # (TB, OUT)

    # ---- fused fc + (T + I) @ conv_w: one MXU matmul produces each cloud's
    #      effective pointwise-conv weights, flattened as (r, o) -> r*OUT + o.
    weff = jnp.dot(pooled, wbig_ref[...],
                   preferred_element_type=jnp.float32) + beff_ref[...]  # (TB, K*OUT)
    weff_r = [weff[:, r * out_size:(r + 1) * out_size][:, None, :]      # hoisted
              for r in range(k)]                                        # (TB,1,OUT)

    # ---- pointwise conv with per-cloud weights + max over points,
    #      chunked over N with a running max (no full (TB,N,OUT) intermediate).
    nc = 8 if n % 8 == 0 else n
    zmax = None
    for c0 in range(0, n, nc):
        xc = x[:, c0:c0 + nc, :]                                  # (TB, nc, K)
        zc = xc[:, :, 0:1] * weff_r[0]                            # r = 0 (no zero-init)
        for r in range(1, k):
            zc = zc + xc[:, :, r:r + 1] * weff_r[r]
        cmax = jnp.max(zc, axis=1)                                # (TB, OUT)
        zmax = cmax if zmax is None else jnp.maximum(zmax, cmax)
    # TODO(synk): nn.Dropout(rate=0.0) is the identity at inference; intentionally omitted.

    # ---- conv bias (uniform over points -> add after the max), padding mask,
    #      lane-dense store (pack clouds folded into one 128-lane output row).
    zmax = (zmax + bc_ref[...]) * valid_ref[...]                  # (TB, OUT)
    out_ref[...] = zmax.reshape(out_ref.shape)


def _round_up(v, m):
    return ((v + m - 1) // m) * m


def _fuse_conv_params(params, k, out_size):
    """Fold fc + T-construction + (T+I)@conv_w into one weight/bias pair.

    weff[b, r*OUT+o] = wct[r,o] + sum_c (pooled@wfct + bfc)[b, r*K+c] * wct[c,o]
                     = (pooled @ Wbig + beff)[b, r*OUT+o]
    Built with elementwise multiply+sum (exact f32, no matmul precision issues).
    """
    wct = params["wct"].astype(jnp.float32)          # (K, OUT)
    wfct = params["wfct"].astype(jnp.float32)        # (OUT, K*K)
    bfc = params["bfc"].astype(jnp.float32)          # (1, K*K)
    wfct_r = wfct.reshape(out_size, k, k)            # [o', r, c]
    wbig = (wfct_r[:, :, :, None] * wct[None, None, :, :]).sum(axis=2)
    wbig = wbig.reshape(out_size, k * out_size)      # (OUT, K*OUT)
    bfc_r = bfc.reshape(k, k)                        # [r, c]
    beff = wct + (bfc_r[:, :, None] * wct[None, :, :]).sum(axis=1)
    beff = beff.reshape(1, k * out_size)             # (1, K*OUT)
    return wbig, beff


def _pick_tb_and_vmem(bw, n, k, out_size, pack, tb_override):
    align = 8 * pack
    kind = ""
    try:
        kind = jax.devices()[0].device_kind.lower()
    except Exception:
        pass
    if "v6" in kind:          # v6e: 128 MiB physical VMEM -> push block size
        tb_cap, vmem = 4096, 96 * 1024 * 1024
    elif "v7" in kind:        # v7x: 64 MiB VMEM per TensorCore, 2 TCs
        tb_cap, vmem = 2048, 48 * 1024 * 1024
    elif "v5" in kind:        # v5e: conservative, f32 only
        tb_cap, vmem = 1024, 48 * 1024 * 1024
    else:
        tb_cap, vmem = 2048, 48 * 1024 * 1024
    # f32 per-cloud working set (x, h, h2, pooled/weff/zmax/out slabs) with
    # ~1.5x slack for compiler temporaries and double-buffered I/O blocks.
    per_cloud = 4.0 * (n * k + n * HIDDEN + n * out_size
                       + 3 * out_size + k * out_size + 8 * out_size) * 1.5
    tb_budget = max(align, int((vmem // 2) / per_cloud))
    tb = tb_override if tb_override is not None else tb_cap
    tb = max(align, (min(tb, tb_budget, tb_cap) // align) * align)
    if "v7" in kind and bw > 2 * align:
        # keep >= 2 grid steps so the "parallel" grid axis feeds both TensorCores
        tb = min(tb, _round_up(pl.cdiv(bw, 2), align))
    tb = min(tb, _round_up(bw, align))
    return tb, vmem


def _call_kernel(xr, valid, params, wbig, beff, bw, N, K, out_size, pack, tb):
    tb, vmem = _pick_tb_and_vmem(bw, N, K, out_size, pack, tb)
    bw_pad = _round_up(bw, tb)
    if bw_pad != bw:
        xr = jnp.pad(xr, ((0, bw_pad - bw), (0, 0), (0, 0)))
        valid = jnp.pad(valid, ((0, bw_pad - bw), (0, 0)))   # padded clouds -> 0

    full = lambda i: (0, 0)   # small weights: same whole-array block each step
    out = pl.pallas_call(
        pc_encoder_kernel,
        out_shape=jax.ShapeDtypeStruct((bw_pad // pack, pack * out_size),
                                       jnp.float32),
        grid=(bw_pad // tb,),
        in_specs=[
            pl.BlockSpec((tb, N, K), lambda i: (i, 0, 0)),       # x: TB clouds / step
            pl.BlockSpec((tb, 1), lambda i: (i, 0)),             # valid = 1 - mask
            pl.BlockSpec((K, HIDDEN), full),                     # w1^T
            pl.BlockSpec((1, HIDDEN), full),                     # b1
            pl.BlockSpec((HIDDEN, out_size), full),              # w2^T
            pl.BlockSpec((1, out_size), full),                   # b2
            pl.BlockSpec((out_size, K * out_size), full),        # fused Wbig
            pl.BlockSpec((1, K * out_size), full),               # fused beff
            pl.BlockSpec((1, out_size), full),                   # conv bias
        ],
        out_specs=pl.BlockSpec((tb // pack, pack * out_size), lambda i: (i, 0)),
        compiler_params=pltpu.CompilerParams(
            dimension_semantics=("parallel",),
            vmem_limit_bytes=vmem),
    )(xr, valid, params["w1t"], params["b1"], params["w2t"], params["b2"],
      wbig, beff, params["bc"])

    # Unpack the lane-dense slab: pure reshape, free in XLA.
    return out.reshape(bw_pad, out_size)


def pc_encoder_forward(x, padding_mask, params, tb=None):
    B, W, N, K = x.shape
    out_size = params["b2"].shape[-1]
    bw = B * W

    xr = x.reshape(bw, N, K).astype(jnp.float32)
    valid = 1.0 - padding_mask.reshape(bw, 1).astype(jnp.float32)
    wbig, beff = _fuse_conv_params(params, K, out_size)

    # Pack `pack` clouds per 128-lane output row when OUT < 128 (full-width
    # stores); keep a pack=1 fallback in case the in-kernel repack won't lower.
    if out_size % 128 == 0 or 128 % out_size != 0:
        packs = (1,)
    else:
        packs = (128 // out_size, 1)

    out2d = None
    last_err = None
    for pack in packs:
        try:
            out2d = _call_kernel(xr, valid, params, wbig, beff,
                                 bw, N, K, out_size, pack, tb)
            break
        except Exception as e:          # lane-dense repack fallback
            last_err = e
    if out2d is None:
        raise last_err

    return out2d[:bw].reshape(B, W, out_size)


def init_params(key, k, out_size):
    keys = jax.random.split(key, 8)
    s = 0.1
    return {
        "w1t":  s * jax.random.normal(keys[0], (k, HIDDEN), jnp.float32),
        "b1":   s * jax.random.normal(keys[1], (1, HIDDEN), jnp.float32),
        "w2t":  s * jax.random.normal(keys[2], (HIDDEN, out_size), jnp.float32),
        "b2":   s * jax.random.normal(keys[3], (1, out_size), jnp.float32),
        "wfct": s * jax.random.normal(keys[4], (out_size, k * k), jnp.float32),
        "bfc":  s * jax.random.normal(keys[5], (1, k * k), jnp.float32),
        "wct":  s * jax.random.normal(keys[6], (k, out_size), jnp.float32),
        "bc":   s * jax.random.normal(keys[7], (1, out_size), jnp.float32),
    }


def pc_encoder_reference(x, padding_mask, params):
    # Pure-JAX mirror of the PyTorch forward pass (for verification).
    B, W, N, K = x.shape
    xr = x.reshape(B * W, N, K).astype(jnp.float32)
    h = jax.nn.relu(xr @ params["w1t"] + params["b1"])
    h = jax.nn.relu(h @ params["w2t"] + params["b2"])
    pooled = jnp.max(h, axis=1)                                   # (BW, OUT)
    t = pooled @ params["wfct"] + params["bfc"]                   # (BW, K*K)
    T = t.reshape(B * W, K, K) + jnp.eye(K, dtype=jnp.float32)
    y = jnp.einsum("bnk,bkj->bnj", xr, T)                         # bmm
    z = y @ params["wct"] + params["bc"]                          # (BW, N, OUT)
    zmax = jnp.max(z, axis=1).reshape(B, W, -1)
    return zmax * (1.0 - padding_mask[..., None].astype(jnp.float32))


if __name__ == "__main__":
    B, W, N, K, OUT = 2, 4, 16, 3, 64   # input_dim=3 (default), small out_size
    key = jax.random.PRNGKey(0)
    kx, km, kp = jax.random.split(key, 3)
    x = jax.random.normal(kx, (B, W, N, K), jnp.float32)
    padding_mask = (jax.random.uniform(km, (B, W)) < 0.3).astype(jnp.float32)
    params = init_params(kp, K, OUT)

    out = pc_encoder_forward(x, padding_mask, params)
    out = jax.block_until_ready(out)

    ref = pc_encoder_reference(x, padding_mask, params)
    assert out.shape == (B, W, OUT)
    err = float(jnp.max(jnp.abs(out - ref)))
    assert jnp.allclose(out, ref, atol=5e-4, rtol=5e-4), err
    print("KERNEL_OK")
</pallas_src>

<mosaic_0001>
module attributes {stable_mosaic.version = 11 : i64} {
  func.func @pc_encoder_kernel(%arg0: i32, %arg1: memref<16x16x3xf32, #tpu.memory_space<vmem>>, %arg2: memref<16x1xf32, #tpu.memory_space<vmem>>, %arg3: memref<3x32xf32, #tpu.memory_space<vmem>>, %arg4: memref<1x32xf32, #tpu.memory_space<vmem>>, %arg5: memref<32x64xf32, #tpu.memory_space<vmem>>, %arg6: memref<1x64xf32, #tpu.memory_space<vmem>>, %arg7: memref<64x192xf32, #tpu.memory_space<vmem>>, %arg8: memref<1x192xf32, #tpu.memory_space<vmem>>, %arg9: memref<1x64xf32, #tpu.memory_space<vmem>>, %arg10: memref<8x128xf32, #tpu.memory_space<vmem>>) attributes {dimension_semantics = [#tpu.dimension_semantics<parallel>], iteration_bounds = array<i64: 1>, scalar_prefetch = 0 : i64, scratch_operands = 0 : i64, tpu.core_type = #tpu.core_type<tc>, window_params = [{transform_indices = @transform_0, window_bounds = array<i64: 16, 16, 3>}, {transform_indices = @transform_1, window_bounds = array<i64: 16, 1>}, {pipeline_mode = #tpu.pipeline_mode<synchronous>, transform_indices = @transform_2, window_bounds = array<i64: 3, 32>}, {pipeline_mode = #tpu.pipeline_mode<synchronous>, transform_indices = @transform_3, window_bounds = array<i64: 1, 32>}, {pipeline_mode = #tpu.pipeline_mode<synchronous>, transform_indices = @transform_4, window_bounds = array<i64: 32, 64>}, {pipeline_mode = #tpu.pipeline_mode<synchronous>, transform_indices = @transform_5, window_bounds = array<i64: 1, 64>}, {pipeline_mode = #tpu.pipeline_mode<synchronous>, transform_indices = @transform_6, window_bounds = array<i64: 64, 192>}, {pipeline_mode = #tpu.pipeline_mode<synchronous>, transform_indices = @transform_7, window_bounds = array<i64: 1, 192>}, {pipeline_mode = #tpu.pipeline_mode<synchronous>, transform_indices = @transform_8, window_bounds = array<i64: 1, 64>}, {transform_indices = @transform_9, window_bounds = array<i64: 8, 128>}]} {
    %c0 = arith.constant 0 : index
    %c0_0 = arith.constant 0 : index
    %c0_1 = arith.constant 0 : index
    %0 = vector.load %arg1[%c0, %c0_0, %c0_1] : memref<16x16x3xf32, #tpu.memory_space<vmem>>, vector<16x16x3xf32>
    %1 = vector.shape_cast %0 : vector<16x16x3xf32> to vector<256x3xf32>
    %c0_2 = arith.constant 0 : index
    %c0_3 = arith.constant 0 : index
    %2 = vector.load %arg3[%c0_2, %c0_3] : memref<3x32xf32, #tpu.memory_space<vmem>>, vector<3x32xf32>
    %cst = arith.constant dense<0.000000e+00> : vector<256x32xf32>
    %3 = tpu.matmul %1, %2, %cst {dimension_numbers = #tpu.dot_dimension_numbers<[1], [0], [0], [1], [0, 0, 1, 1], [], []>} : vector<256x3xf32>, vector<3x32xf32>, vector<256x32xf32> -> vector<256x32xf32>
    %c0_4 = arith.constant 0 : index
    %c0_5 = arith.constant 0 : index
    %4 = vector.load %arg4[%c0_4, %c0_5] : memref<1x32xf32, #tpu.memory_space<vmem>>, vector<1x32xf32>
    %5 = vector.broadcast %4 : vector<1x32xf32> to vector<256x32xf32>
    %6 = arith.addf %3, %5 : vector<256x32xf32>
    %cst_6 = arith.constant 0.000000e+00 : f32
    %7 = vector.broadcast %cst_6 : f32 to vector<256x32xf32>
    %8 = arith.maximumf %6, %7 : vector<256x32xf32>
    %c0_7 = arith.constant 0 : index
    %c0_8 = arith.constant 0 : index
    %9 = vector.load %arg5[%c0_7, %c0_8] : memref<32x64xf32, #tpu.memory_space<vmem>>, vector<32x64xf32>
    %cst_9 = arith.constant dense<0.000000e+00> : vector<256x64xf32>
    %10 = tpu.matmul %8, %9, %cst_9 {dimension_numbers = #tpu.dot_dimension_numbers<[1], [0], [0], [1], [0, 0, 1, 1], [], []>} : vector<256x32xf32>, vector<32x64xf32>, vector<256x64xf32> -> vector<256x64xf32>
    %c0_10 = arith.constant 0 : index
    %c0_11 = arith.constant 0 : index
    %11 = vector.load %arg6[%c0_10, %c0_11] : memref<1x64xf32, #tpu.memory_space<vmem>>, vector<1x64xf32>
    %12 = vector.broadcast %11 : vector<1x64xf32> to vector<256x64xf32>
    %13 = arith.addf %10, %12 : vector<256x64xf32>
    %cst_12 = arith.constant 0.000000e+00 : f32
    %14 = vector.broadcast %cst_12 : f32 to vector<256x64xf32>
    %15 = arith.maximumf %13, %14 : vector<256x64xf32>
    %16 = vector.shape_cast %15 : vector<256x64xf32> to vector<16x16x64xf32>
    %cst_13 = arith.constant dense<0xFF800000> : vector<16x64xf32>
    %17 = vector.multi_reduction <maximumf>, %16, %cst_13 [1] : vector<16x16x64xf32> to vector<16x64xf32>
    %c0_14 = arith.constant 0 : index
    %c0_15 = arith.constant 0 : index
    %18 = vector.load %arg7[%c0_14, %c0_15] : memref<64x192xf32, #tpu.memory_space<vmem>>, vector<64x192xf32>
    %cst_16 = arith.constant dense<0.000000e+00> : vector<16x192xf32>
    %19 = tpu.matmul %17, %18, %cst_16 {dimension_numbers = #tpu.dot_dimension_numbers<[1], [0], [0], [1], [0, 0, 1, 1], [], []>} : vector<16x64xf32>, vector<64x192xf32>, vector<16x192xf32> -> vector<16x192xf32>
    %c0_17 = arith.constant 0 : index
    %c0_18 = arith.constant 0 : index
    %20 = vector.load %arg8[%c0_17, %c0_18] : memref<1x192xf32, #tpu.memory_space<vmem>>, vector<1x192xf32>
    %21 = vector.broadcast %20 : vector<1x192xf32> to vector<16x192xf32>
    %22 = arith.addf %19, %21 : vector<16x192xf32>
    %23 = vector.extract_strided_slice %22 {offsets = [0, 0], sizes = [16, 64], strides = [1, 1]} : vector<16x192xf32> to vector<16x64xf32>
    %24 = vector.shape_cast %23 : vector<16x64xf32> to vector<16x1x64xf32>
    %25 = vector.extract_strided_slice %22 {offsets = [0, 64], sizes = [16, 64], strides = [1, 1]} : vector<16x192xf32> to vector<16x64xf32>
    %26 = vector.shape_cast %25 : vector<16x64xf32> to vector<16x1x64xf32>
    %27 = vector.extract_strided_slice %22 {offsets = [0, 128], sizes = [16, 64], strides = [1, 1]} : vector<16x192xf32> to vector<16x64xf32>
    %28 = vector.shape_cast %27 : vector<16x64xf32> to vector<16x1x64xf32>
    %29 = vector.extract_strided_slice %0 {offsets = [0, 0, 0], sizes = [16, 8, 3], strides = [1, 1, 1]} : vector<16x16x3xf32> to vector<16x8x3xf32>
    %30 = vector.extract_strided_slice %29 {offsets = [0, 0, 0], sizes = [16, 8, 1], strides = [1, 1, 1]} : vector<16x8x3xf32> to vector<16x8x1xf32>
    %31 = vector.broadcast %30 : vector<16x8x1xf32> to vector<16x8x64xf32>
    %32 = vector.broadcast %24 : vector<16x1x64xf32> to vector<16x8x64xf32>
    %33 = arith.mulf %31, %32 : vector<16x8x64xf32>
    %34 = vector.extract_strided_slice %29 {offsets = [0, 0, 1], sizes = [16, 8, 1], strides = [1, 1, 1]} : vector<16x8x3xf32> to vector<16x8x1xf32>
    %35 = vector.broadcast %34 : vector<16x8x1xf32> to vector<16x8x64xf32>
    %36 = vector.broadcast %26 : vector<16x1x64xf32> to vector<16x8x64xf32>
    %37 = arith.mulf %35, %36 : vector<16x8x64xf32>
    %38 = arith.addf %33, %37 : vector<16x8x64xf32>
    %39 = vector.extract_strided_slice %29 {offsets = [0, 0, 2], sizes = [16, 8, 1], strides = [1, 1, 1]} : vector<16x8x3xf32> to vector<16x8x1xf32>
    %40 = vector.broadcast %39 : vector<16x8x1xf32> to vector<16x8x64xf32>
    %41 = vector.broadcast %28 : vector<16x1x64xf32> to vector<16x8x64xf32>
    %42 = arith.mulf %40, %41 : vector<16x8x64xf32>
    %43 = arith.addf %38, %42 : vector<16x8x64xf32>
    %cst_19 = arith.constant dense<0xFF800000> : vector<16x64xf32>
    %44 = vector.multi_reduction <maximumf>, %43, %cst_19 [1] : vector<16x8x64xf32> to vector<16x64xf32>
    %45 = vector.extract_strided_slice %0 {offsets = [0, 8, 0], sizes = [16, 8, 3], strides = [1, 1, 1]} : vector<16x16x3xf32> to vector<16x8x3xf32>
    %46 = vector.extract_strided_slice %45 {offsets = [0, 0, 0], sizes = [16, 8, 1], strides = [1, 1, 1]} : vector<16x8x3xf32> to vector<16x8x1xf32>
    %47 = vector.broadcast %46 : vector<16x8x1xf32> to vector<16x8x64xf32>
    %48 = vector.broadcast %24 : vector<16x1x64xf32> to vector<16x8x64xf32>
    %49 = arith.mulf %47, %48 : vector<16x8x64xf32>
    %50 = vector.extract_strided_slice %45 {offsets = [0, 0, 1], sizes = [16, 8, 1], strides = [1, 1, 1]} : vector<16x8x3xf32> to vector<16x8x1xf32>
    %51 = vector.broadcast %50 : vector<16x8x1xf32> to vector<16x8x64xf32>
    %52 = vector.broadcast %26 : vector<16x1x64xf32> to vector<16x8x64xf32>
    %53 = arith.mulf %51, %52 : vector<16x8x64xf32>
    %54 = arith.addf %49, %53 : vector<16x8x64xf32>
    %55 = vector.extract_strided_slice %45 {offsets = [0, 0, 2], sizes = [16, 8, 1], strides = [1, 1, 1]} : vector<16x8x3xf32> to vector<16x8x1xf32>
    %56 = vector.broadcast %55 : vector<16x8x1xf32> to vector<16x8x64xf32>
    %57 = vector.broadcast %28 : vector<16x1x64xf32> to vector<16x8x64xf32>
    %58 = arith.mulf %56, %57 : vector<16x8x64xf32>
    %59 = arith.addf %54, %58 : vector<16x8x64xf32>
    %cst_20 = arith.constant dense<0xFF800000> : vector<16x64xf32>
    %60 = vector.multi_reduction <maximumf>, %59, %cst_20 [1] : vector<16x8x64xf32> to vector<16x64xf32>
    %61 = arith.maximumf %44, %60 : vector<16x64xf32>
    %c0_21 = arith.constant 0 : index
    %c0_22 = arith.constant 0 : index
    %62 = vector.load %arg9[%c0_21, %c0_22] : memref<1x64xf32, #tpu.memory_space<vmem>>, vector<1x64xf32>
    %63 = vector.broadcast %62 : vector<1x64xf32> to vector<16x64xf32>
    %64 = arith.addf %61, %63 : vector<16x64xf32>
    %c0_23 = arith.constant 0 : index
    %c0_24 = arith.constant 0 : index
    %65 = vector.load %arg2[%c0_23, %c0_24] : memref<16x1xf32, #tpu.memory_space<vmem>>, vector<16x1xf32>
    %66 = vector.broadcast %65 : vector<16x1xf32> to vector<16x64xf32>
    %67 = arith.mulf %64, %66 : vector<16x64xf32>
    %68 = vector.shape_cast %67 : vector<16x64xf32> to vector<8x128xf32>
    %c0_25 = arith.constant 0 : index
    %c0_26 = arith.constant 0 : index
    %69 = vector.load %arg10[%c0_25, %c0_26] : memref<8x128xf32, #tpu.memory_space<vmem>>, vector<8x128xf32>
    tpu.vector_store %arg10[%c0_25, %c0_26], %68 {strides = array<i32>} : memref<8x128xf32, #tpu.memory_space<vmem>>, vector<8x128xf32>,
    return
  }
  func.func @transform_0(%arg0: i32) -> (i32, i32, i32) {
    %c0_i32 = arith.constant 0 : i32
    %c0_i32_0 = arith.constant 0 : i32
    %c0_i32_1 = arith.constant 0 : i32
    return %arg0, %c0_i32, %c0_i32_0 : i32, i32, i32
  }
  func.func @transform_1(%arg0: i32) -> (i32, i32) {
    %c0_i32 = arith.constant 0 : i32
    %c0_i32_0 = arith.constant 0 : i32
    return %arg0, %c0_i32 : i32, i32
  }
  func.func @transform_2(%arg0: i32) -> (i32, i32) {
    %c0_i32 = arith.constant 0 : i32
    %c0_i32_0 = arith.constant 0 : i32
    %c0_i32_1 = arith.constant 0 : i32
    return %c0_i32, %c0_i32_0 : i32, i32
  }
  func.func @transform_3(%arg0: i32) -> (i32, i32) {
    %c0_i32 = arith.constant 0 : i32
    %c0_i32_0 = arith.constant 0 : i32
    %c0_i32_1 = arith.constant 0 : i32
    return %c0_i32, %c0_i32_0 : i32, i32
  }
  func.func @transform_4(%arg0: i32) -> (i32, i32) {
    %c0_i32 = arith.constant 0 : i32
    %c0_i32_0 = arith.constant 0 : i32
    %c0_i32_1 = arith.constant 0 : i32
    return %c0_i32, %c0_i32_0 : i32, i32
  }
  func.func @transform_5(%arg0: i32) -> (i32, i32) {
    %c0_i32 = arith.constant 0 : i32
    %c0_i32_0 = arith.constant 0 : i32
    %c0_i32_1 = arith.constant 0 : i32
    return %c0_i32, %c0_i32_0 : i32, i32
  }
  func.func @transform_6(%arg0: i32) -> (i32, i32) {
    %c0_i32 = arith.constant 0 : i32
    %c0_i32_0 = arith.constant 0 : i32
    %c0_i32_1 = arith.constant 0 : i32
    return %c0_i32, %c0_i32_0 : i32, i32
  }
  func.func @transform_7(%arg0: i32) -> (i32, i32) {
    %c0_i32 = arith.constant 0 : i32
    %c0_i32_0 = arith.constant 0 : i32
    %c0_i32_1 = arith.constant 0 : i32
    return %c0_i32, %c0_i32_0 : i32, i32
  }
  func.func @transform_8(%arg0: i32) -> (i32, i32) {
    %c0_i32 = arith.constant 0 : i32
    %c0_i32_0 = arith.constant 0 : i32
    %c0_i32_1 = arith.constant 0 : i32
    return %c0_i32, %c0_i32_0 : i32, i32
  }
  func.func @transform_9(%arg0: i32) -> (i32, i32) {
    %c0_i32 = arith.constant 0 : i32
    %c0_i32_0 = arith.constant 0 : i32
    return %arg0, %c0_i32 : i32, i32
  }
}

module attributes {stable_mosaic.version = 11 : i64} {
  func.func @pc_encoder_kernel(%arg0: i32, %arg1: memref<8x16x3xf32, #tpu.memory_space<vmem>>, %arg2: memref<8x1xf32, #tpu.memory_space<vmem>>, %arg3: memref<3x32xf32, #tpu.memory_space<vmem>>, %arg4: memref<1x32xf32, #tpu.memory_space<vmem>>, %arg5: memref<32x64xf32, #tpu.memory_space<vmem>>, %arg6: memref<1x64xf32, #tpu.memory_space<vmem>>, %arg7: memref<64x192xf32, #tpu.memory_space<vmem>>, %arg8: memref<1x192xf32, #tpu.memory_space<vmem>>, %arg9: memref<1x64xf32, #tpu.memory_space<vmem>>, %arg10: memref<8x64xf32, #tpu.memory_space<vmem>>) attributes {dimension_semantics = [#tpu.dimension_semantics<parallel>], iteration_bounds = array<i64: 1>, scalar_prefetch = 0 : i64, scratch_operands = 0 : i64, tpu.core_type = #tpu.core_type<tc>, window_params = [{transform_indices = @transform_0, window_bounds = array<i64: 8, 16, 3>}, {transform_indices = @transform_1, window_bounds = array<i64: 8, 1>}, {pipeline_mode = #tpu.pipeline_mode<synchronous>, transform_indices = @transform_2, window_bounds = array<i64: 3, 32>}, {pipeline_mode = #tpu.pipeline_mode<synchronous>, transform_indices = @transform_3, window_bounds = array<i64: 1, 32>}, {pipeline_mode = #tpu.pipeline_mode<synchronous>, transform_indices = @transform_4, window_bounds = array<i64: 32, 64>}, {pipeline_mode = #tpu.pipeline_mode<synchronous>, transform_indices = @transform_5, window_bounds = array<i64: 1, 64>}, {pipeline_mode = #tpu.pipeline_mode<synchronous>, transform_indices = @transform_6, window_bounds = array<i64: 64, 192>}, {pipeline_mode = #tpu.pipeline_mode<synchronous>, transform_indices = @transform_7, window_bounds = array<i64: 1, 192>}, {pipeline_mode = #tpu.pipeline_mode<synchronous>, transform_indices = @transform_8, window_bounds = array<i64: 1, 64>}, {transform_indices = @transform_9, window_bounds = array<i64: 8, 64>}]} {
    %c0 = arith.constant 0 : index
    %c0_0 = arith.constant 0 : index
    %c0_1 = arith.constant 0 : index
    %0 = vector.load %arg1[%c0, %c0_0, %c0_1] : memref<8x16x3xf32, #tpu.memory_space<vmem>>, vector<8x16x3xf32>
    %1 = vector.shape_cast %0 : vector<8x16x3xf32> to vector<128x3xf32>
    %c0_2 = arith.constant 0 : index
    %c0_3 = arith.constant 0 : index
    %2 = vector.load %arg3[%c0_2, %c0_3] : memref<3x32xf32, #tpu.memory_space<vmem>>, vector<3x32xf32>
    %cst = arith.constant dense<0.000000e+00> : vector<128x32xf32>
    %3 = tpu.matmul %1, %2, %cst {dimension_numbers = #tpu.dot_dimension_numbers<[1], [0], [0], [1], [0, 0, 1, 1], [], []>} : vector<128x3xf32>, vector<3x32xf32>, vector<128x32xf32> -> vector<128x32xf32>
    %c0_4 = arith.constant 0 : index
    %c0_5 = arith.constant 0 : index
    %4 = vector.load %arg4[%c0_4, %c0_5] : memref<1x32xf32, #tpu.memory_space<vmem>>, vector<1x32xf32>
    %5 = vector.broadcast %4 : vector<1x32xf32> to vector<128x32xf32>
    %6 = arith.addf %3, %5 : vector<128x32xf32>
    %cst_6 = arith.constant 0.000000e+00 : f32
    %7 = vector.broadcast %cst_6 : f32 to vector<128x32xf32>
    %8 = arith.maximumf %6, %7 : vector<128x32xf32>
    %c0_7 = arith.constant 0 : index
    %c0_8 = arith.constant 0 : index
    %9 = vector.load %arg5[%c0_7, %c0_8] : memref<32x64xf32, #tpu.memory_space<vmem>>, vector<32x64xf32>
    %cst_9 = arith.constant dense<0.000000e+00> : vector<128x64xf32>
    %10 = tpu.matmul %8, %9, %cst_9 {dimension_numbers = #tpu.dot_dimension_numbers<[1], [0], [0], [1], [0, 0, 1, 1], [], []>} : vector<128x32xf32>, vector<32x64xf32>, vector<128x64xf32> -> vector<128x64xf32>
    %c0_10 = arith.constant 0 : index
    %c0_11 = arith.constant 0 : index
    %11 = vector.load %arg6[%c0_10, %c0_11] : memref<1x64xf32, #tpu.memory_space<vmem>>, vector<1x64xf32>
    %12 = vector.broadcast %11 : vector<1x64xf32> to vector<128x64xf32>
    %13 = arith.addf %10, %12 : vector<128x64xf32>
    %cst_12 = arith.constant 0.000000e+00 : f32
    %14 = vector.broadcast %cst_12 : f32 to vector<128x64xf32>
    %15 = arith.maximumf %13, %14 : vector<128x64xf32>
    %16 = vector.shape_cast %15 : vector<128x64xf32> to vector<8x16x64xf32>
    %cst_13 = arith.constant dense<0xFF800000> : vector<8x64xf32>
    %17 = vector.multi_reduction <maximumf>, %16, %cst_13 [1] : vector<8x16x64xf32> to vector<8x64xf32>
    %c0_14 = arith.constant 0 : index
    %c0_15 = arith.constant 0 : index
    %18 = vector.load %arg7[%c0_14, %c0_15] : memref<64x192xf32, #tpu.memory_space<vmem>>, vector<64x192xf32>
    %cst_16 = arith.constant dense<0.000000e+00> : vector<8x192xf32>
    %19 = tpu.matmul %17, %18, %cst_16 {dimension_numbers = #tpu.dot_dimension_numbers<[1], [0], [0], [1], [0, 0, 1, 1], [], []>} : vector<8x64xf32>, vector<64x192xf32>, vector<8x192xf32> -> vector<8x192xf32>
    %c0_17 = arith.constant 0 : index
    %c0_18 = arith.constant 0 : index
    %20 = vector.load %arg8[%c0_17, %c0_18] : memref<1x192xf32, #tpu.memory_space<vmem>>, vector<1x192xf32>
    %21 = vector.broadcast %20 : vector<1x192xf32> to vector<8x192xf32>
    %22 = arith.addf %19, %21 : vector<8x192xf32>
    %23 = vector.extract_strided_slice %22 {offsets = [0, 0], sizes = [8, 64], strides = [1, 1]} : vector<8x192xf32> to vector<8x64xf32>
    %24 = vector.shape_cast %23 : vector<8x64xf32> to vector<8x1x64xf32>
    %25 = vector.extract_strided_slice %22 {offsets = [0, 64], sizes = [8, 64], strides = [1, 1]} : vector<8x192xf32> to vector<8x64xf32>
    %26 = vector.shape_cast %25 : vector<8x64xf32> to vector<8x1x64xf32>
    %27 = vector.extract_strided_slice %22 {offsets = [0, 128], sizes = [8, 64], strides = [1, 1]} : vector<8x192xf32> to vector<8x64xf32>
    %28 = vector.shape_cast %27 : vector<8x64xf32> to vector<8x1x64xf32>
    %29 = vector.extract_strided_slice %0 {offsets = [0, 0, 0], sizes = [8, 8, 3], strides = [1, 1, 1]} : vector<8x16x3xf32> to vector<8x8x3xf32>
    %30 = vector.extract_strided_slice %29 {offsets = [0, 0, 0], sizes = [8, 8, 1], strides = [1, 1, 1]} : vector<8x8x3xf32> to vector<8x8x1xf32>
    %31 = vector.broadcast %30 : vector<8x8x1xf32> to vector<8x8x64xf32>
    %32 = vector.broadcast %24 : vector<8x1x64xf32> to vector<8x8x64xf32>
    %33 = arith.mulf %31, %32 : vector<8x8x64xf32>
    %34 = vector.extract_strided_slice %29 {offsets = [0, 0, 1], sizes = [8, 8, 1], strides = [1, 1, 1]} : vector<8x8x3xf32> to vector<8x8x1xf32>
    %35 = vector.broadcast %34 : vector<8x8x1xf32> to vector<8x8x64xf32>
    %36 = vector.broadcast %26 : vector<8x1x64xf32> to vector<8x8x64xf32>
    %37 = arith.mulf %35, %36 : vector<8x8x64xf32>
    %38 = arith.addf %33, %37 : vector<8x8x64xf32>
    %39 = vector.extract_strided_slice %29 {offsets = [0, 0, 2], sizes = [8, 8, 1], strides = [1, 1, 1]} : vector<8x8x3xf32> to vector<8x8x1xf32>
    %40 = vector.broadcast %39 : vector<8x8x1xf32> to vector<8x8x64xf32>
    %41 = vector.broadcast %28 : vector<8x1x64xf32> to vector<8x8x64xf32>
    %42 = arith.mulf %40, %41 : vector<8x8x64xf32>
    %43 = arith.addf %38, %42 : vector<8x8x64xf32>
    %cst_19 = arith.constant dense<0xFF800000> : vector<8x64xf32>
    %44 = vector.multi_reduction <maximumf>, %43, %cst_19 [1] : vector<8x8x64xf32> to vector<8x64xf32>
    %45 = vector.extract_strided_slice %0 {offsets = [0, 8, 0], sizes = [8, 8, 3], strides = [1, 1, 1]} : vector<8x16x3xf32> to vector<8x8x3xf32>
    %46 = vector.extract_strided_slice %45 {offsets = [0, 0, 0], sizes = [8, 8, 1], strides = [1, 1, 1]} : vector<8x8x3xf32> to vector<8x8x1xf32>
    %47 = vector.broadcast %46 : vector<8x8x1xf32> to vector<8x8x64xf32>
    %48 = vector.broadcast %24 : vector<8x1x64xf32> to vector<8x8x64xf32>
    %49 = arith.mulf %47, %48 : vector<8x8x64xf32>
    %50 = vector.extract_strided_slice %45 {offsets = [0, 0, 1], sizes = [8, 8, 1], strides = [1, 1, 1]} : vector<8x8x3xf32> to vector<8x8x1xf32>
    %51 = vector.broadcast %50 : vector<8x8x1xf32> to vector<8x8x64xf32>
    %52 = vector.broadcast %26 : vector<8x1x64xf32> to vector<8x8x64xf32>
    %53 = arith.mulf %51, %52 : vector<8x8x64xf32>
    %54 = arith.addf %49, %53 : vector<8x8x64xf32>
    %55 = vector.extract_strided_slice %45 {offsets = [0, 0, 2], sizes = [8, 8, 1], strides = [1, 1, 1]} : vector<8x8x3xf32> to vector<8x8x1xf32>
    %56 = vector.broadcast %55 : vector<8x8x1xf32> to vector<8x8x64xf32>
    %57 = vector.broadcast %28 : vector<8x1x64xf32> to vector<8x8x64xf32>
    %58 = arith.mulf %56, %57 : vector<8x8x64xf32>
    %59 = arith.addf %54, %58 : vector<8x8x64xf32>
    %cst_20 = arith.constant dense<0xFF800000> : vector<8x64xf32>
    %60 = vector.multi_reduction <maximumf>, %59, %cst_20 [1] : vector<8x8x64xf32> to vector<8x64xf32>
    %61 = arith.maximumf %44, %60 : vector<8x64xf32>
    %c0_21 = arith.constant 0 : index
    %c0_22 = arith.constant 0 : index
    %62 = vector.load %arg9[%c0_21, %c0_22] : memref<1x64xf32, #tpu.memory_space<vmem>>, vector<1x64xf32>
    %63 = vector.broadcast %62 : vector<1x64xf32> to vector<8x64xf32>
    %64 = arith.addf %61, %63 : vector<8x64xf32>
    %c0_23 = arith.constant 0 : index
    %c0_24 = arith.constant 0 : index
    %65 = vector.load %arg2[%c0_23, %c0_24] : memref<8x1xf32, #tpu.memory_space<vmem>>, vector<8x1xf32>
    %66 = vector.broadcast %65 : vector<8x1xf32> to vector<8x64xf32>
    %67 = arith.mulf %64, %66 : vector<8x64xf32>
    %c0_25 = arith.constant 0 : index
    %c0_26 = arith.constant 0 : index
    %68 = vector.load %arg10[%c0_25, %c0_26] : memref<8x64xf32, #tpu.memory_space<vmem>>, vector<8x64xf32>
    tpu.vector_store %arg10[%c0_25, %c0_26], %67 {strides = array<i32>} : memref<8x64xf32, #tpu.memory_space<vmem>>, vector<8x64xf32>,
    return
  }
  func.func @transform_0(%arg0: i32) -> (i32, i32, i32) {
    %c0_i32 = arith.constant 0 : i32
    %c0_i32_0 = arith.constant 0 : i32
    %c0_i32_1 = arith.constant 0 : i32
    return %arg0, %c0_i32, %c0_i32_0 : i32, i32, i32
  }
  func.func @transform_1(%arg0: i32) -> (i32, i32) {
    %c0_i32 = arith.constant 0 : i32
    %c0_i32_0 = arith.constant 0 : i32
    return %arg0, %c0_i32 : i32, i32
  }
  func.func @transform_2(%arg0: i32) -> (i32, i32) {
    %c0_i32 = arith.constant 0 : i32
    %c0_i32_0 = arith.constant 0 : i32
    %c0_i32_1 = arith.constant 0 : i32
    return %c0_i32, %c0_i32_0 : i32, i32
  }
  func.func @transform_3(%arg0: i32) -> (i32, i32) {
    %c0_i32 = arith.constant 0 : i32
    %c0_i32_0 = arith.constant 0 : i32
    %c0_i32_1 = arith.constant 0 : i32
    return %c0_i32, %c0_i32_0 : i32, i32
  }
  func.func @transform_4(%arg0: i32) -> (i32, i32) {
    %c0_i32 = arith.constant 0 : i32
    %c0_i32_0 = arith.constant 0 : i32
    %c0_i32_1 = arith.constant 0 : i32
    return %c0_i32, %c0_i32_0 : i32, i32
  }
  func.func @transform_5(%arg0: i32) -> (i32, i32) {
    %c0_i32 = arith.constant 0 : i32
    %c0_i32_0 = arith.constant 0 : i32
    %c0_i32_1 = arith.constant 0 : i32
    return %c0_i32, %c0_i32_0 : i32, i32
  }
  func.func @transform_6(%arg0: i32) -> (i32, i32) {
    %c0_i32 = arith.constant 0 : i32
    %c0_i32_0 = arith.constant 0 : i32
    %c0_i32_1 = arith.constant 0 : i32
    return %c0_i32, %c0_i32_0 : i32, i32
  }
  func.func @transform_7(%arg0: i32) -> (i32, i32) {
    %c0_i32 = arith.constant 0 : i32
    %c0_i32_0 = arith.constant 0 : i32
    %c0_i32_1 = arith.constant 0 : i32
    return %c0_i32, %c0_i32_0 : i32, i32
  }
  func.func @transform_8(%arg0: i32) -> (i32, i32) {
    %c0_i32 = arith.constant 0 : i32
    %c0_i32_0 = arith.constant 0 : i32
    %c0_i32_1 = arith.constant 0 : i32
    return %c0_i32, %c0_i32_0 : i32, i32
  }
  func.func @transform_9(%arg0: i32) -> (i32, i32) {
    %c0_i32 = arith.constant 0 : i32
    %c0_i32_0 = arith.constant 0 : i32
    return %arg0, %c0_i32 : i32, i32
  }
}

</mosaic_0001>

<llo_original>
// kernel: tpu_custom_call.1
$region0: #{tpu_custom_call.1}
  #allocation0 [shape = 'u32[]', space=smem, size = 0x4, offset = 0x4, fixed_abs, tag = 'smem constant byte address 0x4 - core index']
  #allocation1 [shape = 'u32[144,128]{1,0:T(1,128)}', space=vmem, size = 0x12000, scoped, tag = 'internal scratch']
  %s0 = inlined_call_operand.vmem [shape: f32[8,16,3], index: 0, kind: input, shape index: {}]
  %s1 = inlined_call_operand.vmem [shape: f32[8,1], index: 1, kind: input, shape index: {}]
  %s2 = inlined_call_operand.vmem [shape: f32[3,32], index: 2, kind: input, shape index: {}]
  %s3 = inlined_call_operand.vmem [shape: f32[1,32], index: 3, kind: input, shape index: {}]
  %s4 = inlined_call_operand.vmem [shape: f32[32,64], index: 4, kind: input, shape index: {}]
  %s5 = inlined_call_operand.vmem [shape: f32[1,64], index: 5, kind: input, shape index: {}]
  %s6 = inlined_call_operand.vmem [shape: f32[64,192], index: 6, kind: input, shape index: {}]
  %s7 = inlined_call_operand.vmem [shape: f32[1,192], index: 7, kind: input, shape index: {}]
  %s8 = inlined_call_operand.vmem [shape: f32[1,64], index: 8, kind: input, shape index: {}]
  %s9 = inlined_call_operand.hbm [shape: f32[8,64], index: 9, kind: output, shape index: {}]
  %s10 = sld [smem:[#allocation0]]
  $region46: #{tpu_custom_call.1} parent=0
    _
  %s12 = ssub.s32 1, %s10
  %s13 = scalar_select 0, %s12, %s10
  $region1: #{tpu_custom_call.1} parent=0
    #allocation2 [shape = 'u8[4096]{0}', space=vmem, size = 0x1000, scoped, tag = 'output window, operand 0, single buffered']
    #allocation3 [shape = 's32[1]{0}', space=sflag, size = 0x4, scoped, tag = 'scoped memory for tpu_custom_call.1']
    %14 = vsyncpa [#allocation3], 0
    // Predicated region
    $region2: #{tpu_custom_call.1} parent=1 // pred_check
      _
    $region3: #{tpu_custom_call.1} parent=1 // pred_check_branch
      %16 = sbr.rel (0) target = $region5
    $region4: #{tpu_custom_call.1} parent=1 // pred_region
      _
    $region5: #{tpu_custom_call.1} parent=1 // pred_fallthru
      _
    // Predicated region
    $region6: #{tpu_custom_call.1} parent=1 // pred_check
      _
    $region7: #{tpu_custom_call.1} parent=1 // pred_check_branch
      %18 = sbr.rel (0) target = $region9
    $region8: #{tpu_custom_call.1} parent=1 // pred_region
      _
    $region9: #{tpu_custom_call.1} parent=1 // pred_fallthru
      _
    // Predicated region
    $region10: #{tpu_custom_call.1} parent=1 // pred_check
      _
    $region11: #{tpu_custom_call.1} parent=1 // pred_check_branch
      %20 = sbr.rel (0) target = $region13
    $region12: #{tpu_custom_call.1} parent=1 // pred_region
      _
    $region13: #{tpu_custom_call.1} parent=1 // pred_fallthru
      _
    // Predicated region
    $region14: #{tpu_custom_call.1} parent=1 // pred_check
      _
    $region15: #{tpu_custom_call.1} parent=1 // pred_check_branch
      %22 = sbr.rel (0) target = $region17
    $region16: #{tpu_custom_call.1} parent=1 // pred_region
      _
    $region17: #{tpu_custom_call.1} parent=1 // pred_fallthru
      _
    // Predicated region
    $region18: #{tpu_custom_call.1} parent=1 // pred_check
      _
    $region19: #{tpu_custom_call.1} parent=1 // pred_check_branch
      %24 = sbr.rel (0) target = $region21
    $region20: #{tpu_custom_call.1} parent=1 // pred_region
      _
    $region21: #{tpu_custom_call.1} parent=1 // pred_fallthru
      _
    // Predicated region
    $region22: #{tpu_custom_call.1} parent=1 // pred_check
      _
    $region23: #{tpu_custom_call.1} parent=1 // pred_check_branch
      %26 = sbr.rel (0) target = $region25
    $region24: #{tpu_custom_call.1} parent=1 // pred_region
      _
    $region25: #{tpu_custom_call.1} parent=1 // pred_fallthru
      _
    // Predicated region
    $region26: #{tpu_custom_call.1} parent=1 // pred_check
      _
    $region27: #{tpu_custom_call.1} parent=1 // pred_check_branch
      %28 = sbr.rel (0) target = $region29
    $region28: #{tpu_custom_call.1} parent=1 // pred_region
      _
    $region29: #{tpu_custom_call.1} parent=1 // pred_fallthru
      _
    // Predicated region
    $region30: #{tpu_custom_call.1} parent=1 // pred_check
      _
    $region31: #{tpu_custom_call.1} parent=1 // pred_check_branch
      %30 = sbr.rel (0) target = $region33
    $region32: #{tpu_custom_call.1} parent=1 // pred_region
      _
    $region33: #{tpu_custom_call.1} parent=1 // pred_fallthru
      _
    // Predicated region
    $region34: #{tpu_custom_call.1} parent=1 // pred_check
      _
    $region35: #{tpu_custom_call.1} parent=1 // pred_check_branch
      %32 = sbr.rel (0) target = $region37
    $region36: #{tpu_custom_call.1} parent=1 // pred_region
      _
    $region37: #{tpu_custom_call.1} parent=1 // pred_fallthru
      _
    %v33 = vld [vmem:[%s0] sm:$0xff]
    %v34 = vld [vmem:[%s0 + $0x8] sm:$0xff]
    %v35 = vld [vmem:[%s0 + $0x10] sm:$0xff]
    %v36 = vld [vmem:[%s0 + $0x18] sm:$0xff]
    %v37 = vld [vmem:[%s0 + $0x20] sm:$0xff]
    %v38 = vld [vmem:[%s0 + $0x28] sm:$0xff]
    %v39 = vld [vmem:[%s0 + $0x30] sm:$0xff]
    %v40 = vld [vmem:[%s0 + $0x38] sm:$0xff]
    %v41 = vld [vmem:[%s0 + $0x40] sm:$0xff]
    %v42 = vld [vmem:[%s0 + $0x48] sm:$0xff]
    %v43 = vld [vmem:[%s0 + $0x50] sm:$0xff]
    %v44 = vld [vmem:[%s0 + $0x58] sm:$0xff]
    %v45 = vld [vmem:[%s0 + $0x60] sm:$0xff]
    %v46 = vld [vmem:[%s0 + $0x68] sm:$0xff]
    %v47 = vld [vmem:[%s0 + $0x70] sm:$0xff]
    %v48 = vld [vmem:[%s0 + $0x78] sm:$0xff]
    %v49 = vld [vmem:[%s2] sm:$0x7]
    %v50 = vld [vmem:[%s3] sm:$0x1]
    %v52 = vlaneseq
    %v53 = vshrl.u32 %v52, 7
    %v54 = vsub.s32 0, %v53
    %v55 = vrot.slane %v50, %v54
    %vm57 = vcmask 23552
    %v59 = vsel %vm57, %v33, 0
    %v62 = vsel %vm57, %v34, 0
    %v65 = vsel %vm57, %v35, 0
    %v68 = vsel %vm57, %v36, 0
    %v71 = vsel %vm57, %v37, 0
    %v74 = vsel %vm57, %v38, 0
    %v77 = vsel %vm57, %v39, 0
    %v80 = vsel %vm57, %v40, 0
    %v83 = vsel %vm57, %v41, 0
    %v86 = vsel %vm57, %v42, 0
    %v89 = vsel %vm57, %v43, 0
    %v92 = vsel %vm57, %v44, 0
    %v95 = vsel %vm57, %v45, 0
    %v98 = vsel %vm57, %v46, 0
    %v101 = vsel %vm57, %v47, 0
    %v104 = vsel %vm57, %v48, 0
    %vm106 = vcmask 1042432
    %v108 = vsel %vm106, %v49, 0
    %110 = vmatprep.subr.mxu0 0.0
    %111 = vmatpush1.msra.mxu0 %v108
    %112 = vmatprep.subr.mxu0 0.0
    %113 = vmatpush1.msra.mxu0 0.0
    %114 = vmatprep.subr.mxu0 0.0
    %115 = vmatpush1.msra.mxu0 0.0
    %116 = vmatprep.subr.mxu0 0.0
    %117 = vmatpush1.msra.mxu0 0.0
    %118 = vmatprep.subr.mxu0 0.0
    %119 = vmatpush1.msra.mxu0 0.0
    %120 = vmatprep.subr.mxu0 0.0
    %121 = vmatpush1.msra.mxu0 0.0
    %122 = vmatprep.subr.mxu0 0.0
    %123 = vmatpush1.msra.mxu0 0.0
    %124 = vmatprep.subr.mxu0 0.0
    %125 = vmatpush1.msra.mxu0 0.0
    %126 = vmatprep.subr.mxu0 0.0
    %127 = vmatpush1.msra.mxu0 0.0
    %128 = vmatprep.subr.mxu0 0.0
    %129 = vmatpush1.msra.mxu0 0.0
    %130 = vmatprep.subr.mxu0 0.0
    %131 = vmatpush1.msra.mxu0 0.0
    %132 = vmatprep.subr.mxu0 0.0
    %133 = vmatpush1.msra.mxu0 0.0
    %134 = vmatprep.subr.mxu0 0.0
    %135 = vmatpush1.msra.mxu0 0.0
    %136 = vmatprep.subr.mxu0 0.0
    %137 = vmatpush1.msra.mxu0 0.0
    %138 = vmatprep.subr.mxu0 0.0
    %139 = vmatpush1.msra.mxu0 0.0
    %140 = vmatprep.subr.mxu0 0.0
    %141 = vmatpush1.msra.mxu0 0.0
    %142 = vmatprep.subr.mxu0 0.0
    %143 = vmatpush1.msra.mxu0 0.0
    %144 = vmatprep.subr.mxu0 0.0
    %145 = vmatpush1.msra.mxu0 0.0
    %146 = vmatprep.subr.mxu0 0.0
    %147 = vmatpush1.msra.mxu0 0.0
    %148 = vmatprep.subr.mxu0 0.0
    %149 = vmatpush1.msra.mxu0 0.0
    %150 = vmatprep.subr.mxu0 0.0
    %151 = vmatpush1.msra.mxu0 0.0
    %152 = vmatprep.subr.mxu0 0.0
    %153 = vmatpush1.msra.mxu0 0.0
    %154 = vmatprep.subr.mxu0 0.0
    %155 = vmatpush1.msra.mxu0 0.0
    %156 = vmatprep.subr.mxu0 0.0
    %157 = vmatpush1.msra.mxu0 0.0
    %158 = vmatprep.subr.mxu0 0.0
    %159 = vmatpush1.msra.mxu0 0.0
    %160 = vmatprep.subr.mxu0 0.0
    %161 = vmatpush1.msra.mxu0 0.0
    %162 = vmatprep.subr.mxu0 0.0
    %163 = vmatpush1.msra.mxu0 0.0
    %164 = vmatprep.subr.mxu0 0.0
    %165 = vmatpush1.msra.mxu0 0.0
    %166 = vmatprep.subr.mxu0 0.0
    %167 = vmatpush1.msra.mxu0 0.0
    %168 = vmatprep.subr.mxu0 0.0
    %169 = vmatpush1.msra.mxu0 0.0
    %170 = vmatprep.subr.mxu0 0.0
    %171 = vmatpush1.msra.mxu0 0.0
    %172 = vmatprep.subr.mxu0 0.0
    %173 = vmatpush1.msra.mxu0 0.0
    %174 = vmatprep.mubr.f32.mxu0 0.0
    %175 = vmatmul.mubr.f32.gmra.mrb[0].mxu0 %v59
    %v176 = vpop.f32.mrb[0].mxu0
    %v177 = vadd.f32 %v55, %v176
    %v178 = vpop.f32.mrb[0].mxu0
    %179 = vmatprep.mubr.f32.mxu0 0.0
    %180 = vmatmul.mubr.f32.gmra.mrb[0].mxu0 %v62
    %v181 = vpop.f32.mrb[0].mxu0
    %v182 = vadd.f32 %v55, %v181
    %v183 = vpop.f32.mrb[0].mxu0
    %184 = vmatprep.mubr.f32.mxu0 0.0
    %185 = vmatmul.mubr.f32.gmra.mrb[0].mxu0 %v65
    %v186 = vpop.f32.mrb[0].mxu0
    %v187 = vadd.f32 %v55, %v186
    %v188 = vpop.f32.mrb[0].mxu0
    %189 = vmatprep.mubr.f32.mxu0 0.0
    %190 = vmatmul.mubr.f32.gmra.mrb[0].mxu0 %v68
    %v191 = vpop.f32.mrb[0].mxu0
    %v192 = vadd.f32 %v55, %v191
    %v193 = vpop.f32.mrb[0].mxu0
    %194 = vmatprep.mubr.f32.mxu0 0.0
    %195 = vmatmul.mubr.f32.gmra.mrb[0].mxu0 %v71
    %v196 = vpop.f32.mrb[0].mxu0
    %v197 = vadd.f32 %v55, %v196
    %v198 = vpop.f32.mrb[0].mxu0
    %199 = vmatprep.mubr.f32.mxu0 0.0
    %200 = vmatmul.mubr.f32.gmra.mrb[0].mxu0 %v74
    %v201 = vpop.f32.mrb[0].mxu0
    %v202 = vadd.f32 %v55, %v201
    %v203 = vpop.f32.mrb[0].mxu0
    %204 = vmatprep.mubr.f32.mxu0 0.0
    %205 = vmatmul.mubr.f32.gmra.mrb[0].mxu0 %v77
    %v206 = vpop.f32.mrb[0].mxu0
    %v207 = vadd.f32 %v55, %v206
    %v208 = vpop.f32.mrb[0].mxu0
    %209 = vmatprep.mubr.f32.mxu0 0.0
    %210 = vmatmul.mubr.f32.gmra.mrb[0].mxu0 %v80
    %v211 = vpop.f32.mrb[0].mxu0
    %v212 = vadd.f32 %v55, %v211
    %v213 = vpop.f32.mrb[0].mxu0
    %214 = vmatprep.mubr.f32.mxu0 0.0
    %215 = vmatmul.mubr.f32.gmra.mrb[0].mxu0 %v83
    %v216 = vpop.f32.mrb[0].mxu0
    %v217 = vadd.f32 %v55, %v216
    %v218 = vpop.f32.mrb[0].mxu0
    %219 = vmatprep.mubr.f32.mxu0 0.0
    %220 = vmatmul.mubr.f32.gmra.mrb[0].mxu0 %v86
    %v221 = vpop.f32.mrb[0].mxu0
    %v222 = vadd.f32 %v55, %v221
    %v223 = vpop.f32.mrb[0].mxu0
    %224 = vmatprep.mubr.f32.mxu0 0.0
    %225 = vmatmul.mubr.f32.gmra.mrb[0].mxu0 %v89
    %v226 = vpop.f32.mrb[0].mxu0
    %v227 = vadd.f32 %v55, %v226
    %v228 = vpop.f32.mrb[0].mxu0
    %229 = vmatprep.mubr.f32.mxu0 0.0
    %230 = vmatmul.mubr.f32.gmra.mrb[0].mxu0 %v92
    %v231 = vpop.f32.mrb[0].mxu0
    %v232 = vadd.f32 %v55, %v231
    %v233 = vpop.f32.mrb[0].mxu0
    %234 = vmatprep.mubr.f32.mxu0 0.0
    %235 = vmatmul.mubr.f32.gmra.mrb[0].mxu0 %v95
    %v236 = vpop.f32.mrb[0].mxu0
    %v237 = vadd.f32 %v55, %v236
    %v238 = vpop.f32.mrb[0].mxu0
    %239 = vmatprep.mubr.f32.mxu0 0.0
    %240 = vmatmul.mubr.f32.gmra.mrb[0].mxu0 %v98
    %v241 = vpop.f32.mrb[0].mxu0
    %v242 = vadd.f32 %v55, %v241
    %v243 = vpop.f32.mrb[0].mxu0
    %244 = vmatprep.mubr.f32.mxu0 0.0
    %245 = vmatmul.mubr.f32.gmra.mrb[0].mxu0 %v101
    %v246 = vpop.f32.mrb[0].mxu0
    %v247 = vadd.f32 %v55, %v246
    %v248 = vpop.f32.mrb[0].mxu0
    %249 = vmatprep.mubr.f32.mxu0 0.0
    %250 = vmatmul.mubr.f32.gmra.mrb[0].mxu0 %v104
    %v251 = vpop.f32.mrb[0].mxu0
    %v252 = vadd.f32 %v55, %v251
    %v253 = vpop.f32.mrb[0].mxu0
    %254 = vdwg.mxu0
    %v255 = vmax.f32 %v177, 0.0
    %v256 = vmax.f32 %v182, 0.0
    %v257 = vmax.f32 %v187, 0.0
    %v258 = vmax.f32 %v192, 0.0
    %v259 = vmax.f32 %v197, 0.0
    %v260 = vmax.f32 %v202, 0.0
    %v261 = vmax.f32 %v207, 0.0
    %v262 = vmax.f32 %v212, 0.0
    %v263 = vmax.f32 %v217, 0.0
    %v264 = vmax.f32 %v222, 0.0
    %v265 = vmax.f32 %v227, 0.0
    %v266 = vmax.f32 %v232, 0.0
    %v267 = vmax.f32 %v237, 0.0
    %v268 = vmax.f32 %v242, 0.0
    %v269 = vmax.f32 %v247, 0.0
    %v270 = vmax.f32 %v252, 0.0
    %v271 = vld [vmem:[%s4] sm:$0xff]
    %v272 = vld [vmem:[%s4 + $0x8] sm:$0xff]
    %v273 = vld [vmem:[%s4 + $0x10] sm:$0xff]
    %v274 = vld [vmem:[%s4 + $0x18] sm:$0xff]
    %v275 = vld [vmem:[%s5] sm:$0x1]
    %v277 = vlaneseq
    %v278 = vshrl.u32 %v277, 7
    %v279 = vsub.s32 0, %v278
    %v280 = vrot.slane %v275, %v279
    %vm282 = vcmask 261120
    %v284 = vsel %vm282, %v255, 0
    %v287 = vsel %vm282, %v256, 0
    %v290 = vsel %vm282, %v257, 0
    %v293 = vsel %vm282, %v258, 0
    %v296 = vsel %vm282, %v259, 0
    %v299 = vsel %vm282, %v260, 0
    %v302 = vsel %vm282, %v261, 0
    %v305 = vsel %vm282, %v262, 0
    %v308 = vsel %vm282, %v263, 0
    %v311 = vsel %vm282, %v264, 0
    %v314 = vsel %vm282, %v265, 0
    %v317 = vsel %vm282, %v266, 0
    %v320 = vsel %vm282, %v267, 0
    %v323 = vsel %vm282, %v268, 0
    %v326 = vsel %vm282, %v269, 0
    %v329 = vsel %vm282, %v270, 0
    %331 = vmatprep.subr.mxu0 0.0
    %332 = vmatpush1.msra.mxu0 %v271
    %333 = vmatprep.subr.mxu0 0.0
    %334 = vmatpush1.msra.mxu0 %v272
    %335 = vmatprep.subr.mxu0 0.0
    %336 = vmatpush1.msra.mxu0 %v273
    %337 = vmatprep.subr.mxu0 0.0
    %338 = vmatpush1.msra.mxu0 %v274
    %339 = vmatprep.subr.mxu0 0.0
    %340 = vmatpush1.msra.mxu0 0.0
    %341 = vmatprep.subr.mxu0 0.0
    %342 = vmatpush1.msra.mxu0 0.0
    %343 = vmatprep.subr.mxu0 0.0
    %344 = vmatpush1.msra.mxu0 0.0
    %345 = vmatprep.subr.mxu0 0.0
    %346 = vmatpush1.msra.mxu0 0.0
    %347 = vmatprep.subr.mxu0 0.0
    %348 = vmatpush1.msra.mxu0 0.0
    %349 = vmatprep.subr.mxu0 0.0
    %350 = vmatpush1.msra.mxu0 0.0
    %351 = vmatprep.subr.mxu0 0.0
    %352 = vmatpush1.msra.mxu0 0.0
    %353 = vmatprep.subr.mxu0 0.0
    %354 = vmatpush1.msra.mxu0 0.0
    %355 = vmatprep.subr.mxu0 0.0
    %356 = vmatpush1.msra.mxu0 0.0
    %357 = vmatprep.subr.mxu0 0.0
    %358 = vmatpush1.msra.mxu0 0.0
    %359 = vmatprep.subr.mxu0 0.0
    %360 = vmatpush1.msra.mxu0 0.0
    %361 = vmatprep.subr.mxu0 0.0
    %362 = vmatpush1.msra.mxu0 0.0
    %363 = vmatprep.subr.mxu0 0.0
    %364 = vmatpush1.msra.mxu0 0.0
    %365 = vmatprep.subr.mxu0 0.0
    %366 = vmatpush1.msra.mxu0 0.0
    %367 = vmatprep.subr.mxu0 0.0
    %368 = vmatpush1.msra.mxu0 0.0
    %369 = vmatprep.subr.mxu0 0.0
    %370 = vmatpush1.msra.mxu0 0.0
    %371 = vmatprep.subr.mxu0 0.0
    %372 = vmatpush1.msra.mxu0 0.0
    %373 = vmatprep.subr.mxu0 0.0
    %374 = vmatpush1.msra.mxu0 0.0
    %375 = vmatprep.subr.mxu0 0.0
    %376 = vmatpush1.msra.mxu0 0.0
    %377 = vmatprep.subr.mxu0 0.0
    %378 = vmatpush1.msra.mxu0 0.0
    %379 = vmatprep.subr.mxu0 0.0
    %380 = vmatpush1.msra.mxu0 0.0
    %381 = vmatprep.subr.mxu0 0.0
    %382 = vmatpush1.msra.mxu0 0.0
    %383 = vmatprep.subr.mxu0 0.0
    %384 = vmatpush1.msra.mxu0 0.0
    %385 = vmatprep.subr.mxu0 0.0
    %386 = vmatpush1.msra.mxu0 0.0
    %387 = vmatprep.subr.mxu0 0.0
    %388 = vmatpush1.msra.mxu0 0.0
    %389 = vmatprep.subr.mxu0 0.0
    %390 = vmatpush1.msra.mxu0 0.0
    %391 = vmatprep.subr.mxu0 0.0
    %392 = vmatpush1.msra.mxu0 0.0
    %393 = vmatprep.subr.mxu0 0.0
    %394 = vmatpush1.msra.mxu0 0.0
    %395 = vmatprep.mubr.f32.mxu0 0.0
    %396 = vmatmul.mubr.f32.gmra.mrb[0].mxu0 %v284
    %v397 = vpop.f32.mrb[0].mxu0
    %v398 = vadd.f32 %v280, %v397
    %v399 = vpop.f32.mrb[0].mxu0
    %400 = vmatprep.mubr.f32.mxu0 0.0
    %401 = vmatmul.mubr.f32.gmra.mrb[0].mxu0 %v287
    %v402 = vpop.f32.mrb[0].mxu0
    %v403 = vadd.f32 %v280, %v402
    %v404 = vpop.f32.mrb[0].mxu0
    %405 = vmatprep.mubr.f32.mxu0 0.0
    %406 = vmatmul.mubr.f32.gmra.mrb[0].mxu0 %v290
    %v407 = vpop.f32.mrb[0].mxu0
    %v408 = vadd.f32 %v280, %v407
    %v409 = vpop.f32.mrb[0].mxu0
    %410 = vmatprep.mubr.f32.mxu0 0.0
    %411 = vmatmul.mubr.f32.gmra.mrb[0].mxu0 %v293
    %v412 = vpop.f32.mrb[0].mxu0
    %v413 = vadd.f32 %v280, %v412
    %v414 = vpop.f32.mrb[0].mxu0
    %415 = vmatprep.mubr.f32.mxu0 0.0
    %416 = vmatmul.mubr.f32.gmra.mrb[0].mxu0 %v296
    %v417 = vpop.f32.mrb[0].mxu0
    %v418 = vadd.f32 %v280, %v417
    %v419 = vpop.f32.mrb[0].mxu0
    %420 = vmatprep.mubr.f32.mxu0 0.0
    %421 = vmatmul.mubr.f32.gmra.mrb[0].mxu0 %v299
    %v422 = vpop.f32.mrb[0].mxu0
    %v423 = vadd.f32 %v280, %v422
    %v424 = vpop.f32.mrb[0].mxu0
    %425 = vmatprep.mubr.f32.mxu0 0.0
    %426 = vmatmul.mubr.f32.gmra.mrb[0].mxu0 %v302
    %v427 = vpop.f32.mrb[0].mxu0
    %v428 = vadd.f32 %v280, %v427
    %v429 = vpop.f32.mrb[0].mxu0
    %430 = vmatprep.mubr.f32.mxu0 0.0
    %431 = vmatmul.mubr.f32.gmra.mrb[0].mxu0 %v305
    %v432 = vpop.f32.mrb[0].mxu0
    %v433 = vadd.f32 %v280, %v432
    %v434 = vpop.f32.mrb[0].mxu0
    %435 = vmatprep.mubr.f32.mxu0 0.0
    %436 = vmatmul.mubr.f32.gmra.mrb[0].mxu0 %v308
    %v437 = vpop.f32.mrb[0].mxu0
    %v438 = vadd.f32 %v280, %v437
    %v439 = vpop.f32.mrb[0].mxu0
    %440 = vmatprep.mubr.f32.mxu0 0.0
    %441 = vmatmul.mubr.f32.gmra.mrb[0].mxu0 %v311
    %v442 = vpop.f32.mrb[0].mxu0
    %v443 = vadd.f32 %v280, %v442
    %v444 = vpop.f32.mrb[0].mxu0
    %445 = vmatprep.mubr.f32.mxu0 0.0
    %446 = vmatmul.mubr.f32.gmra.mrb[0].mxu0 %v314
    %v447 = vpop.f32.mrb[0].mxu0
    %v448 = vadd.f32 %v280, %v447
    %v449 = vpop.f32.mrb[0].mxu0
    %450 = vmatprep.mubr.f32.mxu0 0.0
    %451 = vmatmul.mubr.f32.gmra.mrb[0].mxu0 %v317
    %v452 = vpop.f32.mrb[0].mxu0
    %v453 = vadd.f32 %v280, %v452
    %v454 = vpop.f32.mrb[0].mxu0
    %455 = vmatprep.mubr.f32.mxu0 0.0
    %456 = vmatmul.mubr.f32.gmra.mrb[0].mxu0 %v320
    %v457 = vpop.f32.mrb[0].mxu0
    %v458 = vadd.f32 %v280, %v457
    %v459 = vpop.f32.mrb[0].mxu0
    %460 = vmatprep.mubr.f32.mxu0 0.0
    %461 = vmatmul.mubr.f32.gmra.mrb[0].mxu0 %v323
    %v462 = vpop.f32.mrb[0].mxu0
    %v463 = vadd.f32 %v280, %v462
    %v464 = vpop.f32.mrb[0].mxu0
    %465 = vmatprep.mubr.f32.mxu0 0.0
    %466 = vmatmul.mubr.f32.gmra.mrb[0].mxu0 %v326
    %v467 = vpop.f32.mrb[0].mxu0
    %v468 = vadd.f32 %v280, %v467
    %v469 = vpop.f32.mrb[0].mxu0
    %470 = vmatprep.mubr.f32.mxu0 0.0
    %471 = vmatmul.mubr.f32.gmra.mrb[0].mxu0 %v329
    %v472 = vpop.f32.mrb[0].mxu0
    %v473 = vadd.f32 %v280, %v472
    %v474 = vpop.f32.mrb[0].mxu0
    %475 = vdwg.mxu0
    %v476 = vmax.f32 %v398, 0.0
    %v477 = vmax.f32 %v403, 0.0
    %v478 = vmax.f32 %v408, 0.0
    %v479 = vmax.f32 %v413, 0.0
    %v480 = vmax.f32 %v418, 0.0
    %v481 = vmax.f32 %v423, 0.0
    %v482 = vmax.f32 %v428, 0.0
    %v483 = vmax.f32 %v433, 0.0
    %v484 = vmax.f32 %v438, 0.0
    %v485 = vmax.f32 %v443, 0.0
    %v486 = vmax.f32 %v448, 0.0
    %v487 = vmax.f32 %v453, 0.0
    %v488 = vmax.f32 %v458, 0.0
    %v489 = vmax.f32 %v463, 0.0
    %v490 = vmax.f32 %v468, 0.0
    %v491 = vmax.f32 %v473, 0.0
    %vm492 = vcmask 523264
    %v493 = vsel %vm492, %v476, -inf
    %v494 = vsel %vm492, %v477, -inf
    %v495 = vmax.f32 %v493, %v494
    %v496 = vrot.slane %v495, 4
    %v497 = vmax.f32 %v495, %v496
    %v498 = vrot.slane %v497, 2
    %v499 = vmax.f32 %v497, %v498
    %v500 = vrot.slane %v499, 1
    %v501 = vmax.f32 %v499, %v500
    %v502 = vsel %vm492, %v478, -inf
    %v503 = vsel %vm492, %v479, -inf
    %v504 = vmax.f32 %v502, %v503
    %v505 = vrot.slane %v504, 4
    %v506 = vmax.f32 %v504, %v505
    %v507 = vrot.slane %v506, 2
    %v508 = vmax.f32 %v506, %v507
    %v509 = vrot.slane %v508, 1
    %v510 = vmax.f32 %v508, %v509
    %v511 = vsel %vm492, %v480, -inf
    %v512 = vsel %vm492, %v481, -inf
    %v513 = vmax.f32 %v511, %v512
    %v514 = vrot.slane %v513, 4
    %v515 = vmax.f32 %v513, %v514
    %v516 = vrot.slane %v515, 2
    %v517 = vmax.f32 %v515, %v516
    %v518 = vrot.slane %v517, 1
    %v519 = vmax.f32 %v517, %v518
    %v520 = vsel %vm492, %v482, -inf
    %v521 = vsel %vm492, %v483, -inf
    %v522 = vmax.f32 %v520, %v521
    %v523 = vrot.slane %v522, 4
    %v524 = vmax.f32 %v522, %v523
    %v525 = vrot.slane %v524, 2
    %v526 = vmax.f32 %v524, %v525
    %v527 = vrot.slane %v526, 1
    %v528 = vmax.f32 %v526, %v527
    %v529 = vsel %vm492, %v484, -inf
    %v530 = vsel %vm492, %v485, -inf
    %v531 = vmax.f32 %v529, %v530
    %v532 = vrot.slane %v531, 4
    %v533 = vmax.f32 %v531, %v532
    %v534 = vrot.slane %v533, 2
    %v535 = vmax.f32 %v533, %v534
    %v536 = vrot.slane %v535, 1
    %v537 = vmax.f32 %v535, %v536
    %v538 = vsel %vm492, %v486, -inf
    %v539 = vsel %vm492, %v487, -inf
    %v540 = vmax.f32 %v538, %v539
    %v541 = vrot.slane %v540, 4
    %v542 = vmax.f32 %v540, %v541
    %v543 = vrot.slane %v542, 2
    %v544 = vmax.f32 %v542, %v543
    %v545 = vrot.slane %v544, 1
    %v546 = vmax.f32 %v544, %v545
    %v547 = vsel %vm492, %v488, -inf
    %v548 = vsel %vm492, %v489, -inf
    %v549 = vmax.f32 %v547, %v548
    %v550 = vrot.slane %v549, 4
    %v551 = vmax.f32 %v549, %v550
    %v552 = vrot.slane %v551, 2
    %v553 = vmax.f32 %v551, %v552
    %v554 = vrot.slane %v553, 1
    %v555 = vmax.f32 %v553, %v554
    %v556 = vsel %vm492, %v490, -inf
    %v557 = vsel %vm492, %v491, -inf
    %v558 = vmax.f32 %v556, %v557
    %v559 = vrot.slane %v558, 4
    %v560 = vmax.f32 %v558, %v559
    %v561 = vrot.slane %v560, 2
    %v562 = vmax.f32 %v560, %v561
    %v563 = vrot.slane %v562, 1
    %v564 = vmax.f32 %v562, %v563
    %v565 = vld [vmem:[%s6] sm:$0xff]
    %v566 = vld [vmem:[%s6 + $0x8] sm:$0xff]
    %v567 = vld [vmem:[%s6 + $0x10] sm:$0xff]
    %v568 = vld [vmem:[%s6 + $0x18] sm:$0xff]
    %v569 = vld [vmem:[%s6 + $0x20] sm:$0xff]
    %v570 = vld [vmem:[%s6 + $0x28] sm:$0xff]
    %v571 = vld [vmem:[%s6 + $0x30] sm:$0xff]
    %v572 = vld [vmem:[%s6 + $0x38] sm:$0xff]
    %v573 = vld [vmem:[%s6 + $0x40] sm:$0xff]
    %v574 = vld [vmem:[%s6 + $0x48] sm:$0xff]
    %v575 = vld [vmem:[%s6 + $0x50] sm:$0xff]
    %v576 = vld [vmem:[%s6 + $0x58] sm:$0xff]
    %v577 = vld [vmem:[%s6 + $0x60] sm:$0xff]
    %v578 = vld [vmem:[%s6 + $0x68] sm:$0xff]
    %v579 = vld [vmem:[%s6 + $0x70] sm:$0xff]
    %v580 = vld [vmem:[%s6 + $0x78] sm:$0xff]
    %v581 = vld [vmem:[%s7] sm:$0x3]
    %v583 = vlaneseq
    %v584 = vshrl.u32 %v583, 7
    %v585 = vsub.s32 0, %v584
    %v586 = vrot.slane %v581, %v585
    %v587 = vlaneseq
    %v588 = vshrl.u32 %v587, 7
    %v589 = vsub.s32 1, %v588
    %v590 = vrot.slane %v581, %v589
    %vm601 = vcmask 1041409
    %v602 = vsel %vm601, %v510, %v501
    %vm603 = vcmask 1042434
    %v604 = vsel %vm603, %v519, %v602
    %vm605 = vcmask 1043459
    %v606 = vsel %vm605, %v528, %v604
    %vm607 = vcmask 1044484
    %v608 = vsel %vm607, %v537, %v606
    %vm609 = vcmask 1045509
    %v610 = vsel %vm609, %v546, %v608
    %vm611 = vcmask 1046534
    %v612 = vsel %vm611, %v555, %v610
    %vm613 = vcmask 1047559
    %v614 = vsel %vm613, %v564, %v612
    %v615 = vsel %vm492, %v614, 0
    %617 = vmatprep.subr.mxu0 %v566
    %618 = vmatpush1.msra.mxu0 %v565
    %619 = vmatprep.subr.mxu0 %v568
    %620 = vmatpush1.msra.mxu0 %v567
    %621 = vmatprep.subr.mxu0 %v570
    %622 = vmatpush1.msra.mxu0 %v569
    %623 = vmatprep.subr.mxu0 %v572
    %624 = vmatpush1.msra.mxu0 %v571
    %625 = vmatprep.subr.mxu0 %v574
    %626 = vmatpush1.msra.mxu0 %v573
    %627 = vmatprep.subr.mxu0 %v576
    %628 = vmatpush1.msra.mxu0 %v575
    %629 = vmatprep.subr.mxu0 %v578
    %630 = vmatpush1.msra.mxu0 %v577
    %631 = vmatprep.subr.mxu0 %v580
    %632 = vmatpush1.msra.mxu0 %v579
    %633 = vmatprep.subr.mxu0 0.0
    %634 = vmatpush1.msra.mxu0 0.0
    %635 = vmatprep.subr.mxu0 0.0
    %636 = vmatpush1.msra.mxu0 0.0
    %637 = vmatprep.subr.mxu0 0.0
    %638 = vmatpush1.msra.mxu0 0.0
    %639 = vmatprep.subr.mxu0 0.0
    %640 = vmatpush1.msra.mxu0 0.0
    %641 = vmatprep.subr.mxu0 0.0
    %642 = vmatpush1.msra.mxu0 0.0
    %643 = vmatprep.subr.mxu0 0.0
    %644 = vmatpush1.msra.mxu0 0.0
    %645 = vmatprep.subr.mxu0 0.0
    %646 = vmatpush1.msra.mxu0 0.0
    %647 = vmatprep.subr.mxu0 0.0
    %648 = vmatpush1.msra.mxu0 0.0
    %649 = vmatprep.subr.mxu0 0.0
    %650 = vmatpush1.msra.mxu0 0.0
    %651 = vmatprep.subr.mxu0 0.0
    %652 = vmatpush1.msra.mxu0 0.0
    %653 = vmatprep.subr.mxu0 0.0
    %654 = vmatpush1.msra.mxu0 0.0
    %655 = vmatprep.subr.mxu0 0.0
    %656 = vmatpush1.msra.mxu0 0.0
    %657 = vmatprep.subr.mxu0 0.0
    %658 = vmatpush1.msra.mxu0 0.0
    %659 = vmatprep.subr.mxu0 0.0
    %660 = vmatpush1.msra.mxu0 0.0
    %661 = vmatprep.subr.mxu0 0.0
    %662 = vmatpush1.msra.mxu0 0.0
    %663 = vmatprep.subr.mxu0 0.0
    %664 = vmatpush1.msra.mxu0 0.0
    %665 = vmatprep.subr.mxu0 0.0
    %666 = vmatpush1.msra.mxu0 0.0
    %667 = vmatprep.subr.mxu0 0.0
    %668 = vmatpush1.msra.mxu0 0.0
    %669 = vmatprep.subr.mxu0 0.0
    %670 = vmatpush1.msra.mxu0 0.0
    %671 = vmatprep.subr.mxu0 0.0
    %672 = vmatpush1.msra.mxu0 0.0
    %673 = vmatprep.subr.mxu0 0.0
    %674 = vmatpush1.msra.mxu0 0.0
    %675 = vmatprep.subr.mxu0 0.0
    %676 = vmatpush1.msra.mxu0 0.0
    %677 = vmatprep.subr.mxu0 0.0
    %678 = vmatpush1.msra.mxu0 0.0
    %679 = vmatprep.subr.mxu0 0.0
    %680 = vmatpush1.msra.mxu0 0.0
    %681 = vmatprep.mubr.f32.mxu0 0.0
    %682 = vmatmul.mubr.f32.gmra.mrb[0].mxu0 %v615
    %v683 = vpop.f32.mrb[0].mxu0
    %v684 = vadd.f32 %v586, %v683
    %v685 = vpop.f32.mrb[0].mxu0
    %v686 = vadd.f32 %v590, %v685
    %687 = vdwg.mxu0
    %v689 = vcombine.high %v684, %v684
    %v691 = vunpack.c.l.s4 1966171168
    %v692 = vunpack.c.0.s8 %v691
    %v693 = vlaneseq
    %v694 = vshrl.u32 %v693, 7
    %v695 = vsub.s32 %v692, %v694
    %v696 = vrot.slane %v684, %v695
    %v698 = vunpack.c.l.s4 1966171168
    %v699 = vunpack.c.0.s8 %v698
    %v700 = vlaneseq
    %v701 = vshrl.u32 %v700, 7
    %v702 = vsub.s32 %v699, %v701
    %v703 = vrot.slane %v689, %v702
    %v704 = vcombine.high %v696, %v696
    %v705 = vcombine.high %v703, %v703
    %v707 = vunpack.c.l.s4 1966171168
    %v708 = vunpack.c.0.s8 %v707
    %v709 = vlaneseq
    %v710 = vshrl.u32 %v709, 7
    %v711 = vsub.s32 %v708, %v710
    %v712 = vrot.slane %v696, %v711
    %v714 = vunpack.c.l.s4 1966171168
    %v715 = vunpack.c.0.s8 %v714
    %v716 = vlaneseq
    %v717 = vshrl.u32 %v716, 7
    %v718 = vsub.s32 %v715, %v717
    %v719 = vrot.slane %v703, %v718
    %v721 = vunpack.c.l.s4 1966171168
    %v722 = vunpack.c.0.s8 %v721
    %v723 = vlaneseq
    %v724 = vshrl.u32 %v723, 7
    %v725 = vsub.s32 %v722, %v724
    %v726 = vrot.slane %v704, %v725
    %v728 = vunpack.c.l.s4 1966171168
    %v729 = vunpack.c.0.s8 %v728
    %v730 = vlaneseq
    %v731 = vshrl.u32 %v730, 7
    %v732 = vsub.s32 %v729, %v731
    %v733 = vrot.slane %v705, %v732
    %v734 = vcombine.high %v712, %v712
    %v735 = vcombine.high %v719, %v719
    %v736 = vcombine.high %v726, %v726
    %v737 = vcombine.high %v733, %v733
    %v739 = vcombine.high %v686, %v686
    %v741 = vunpack.c.l.s4 1966171168
    %v742 = vunpack.c.0.s8 %v741
    %v743 = vlaneseq
    %v744 = vshrl.u32 %v743, 7
    %v745 = vsub.s32 %v742, %v744
    %v746 = vrot.slane %v686, %v745
    %v748 = vunpack.c.l.s4 1966171168
    %v749 = vunpack.c.0.s8 %v748
    %v750 = vlaneseq
    %v751 = vshrl.u32 %v750, 7
    %v752 = vsub.s32 %v749, %v751
    %v753 = vrot.slane %v739, %v752
    %v754 = vcombine.high %v746, %v746
    %v755 = vcombine.high %v753, %v753
    %v757 = vunpack.c.l.s4 1966171168
    %v758 = vunpack.c.0.s8 %v757
    %v759 = vlaneseq
    %v760 = vshrl.u32 %v759, 7
    %v761 = vsub.s32 %v758, %v760
    %v762 = vrot.slane %v746, %v761
    %v764 = vunpack.c.l.s4 1966171168
    %v765 = vunpack.c.0.s8 %v764
    %v766 = vlaneseq
    %v767 = vshrl.u32 %v766, 7
    %v768 = vsub.s32 %v765, %v767
    %v769 = vrot.slane %v753, %v768
    %v771 = vunpack.c.l.s4 1966171168
    %v772 = vunpack.c.0.s8 %v771
    %v773 = vlaneseq
    %v774 = vshrl.u32 %v773, 7
    %v775 = vsub.s32 %v772, %v774
    %v776 = vrot.slane %v754, %v775
    %v778 = vunpack.c.l.s4 1966171168
    %v779 = vunpack.c.0.s8 %v778
    %v780 = vlaneseq
    %v781 = vshrl.u32 %v780, 7
    %v782 = vsub.s32 %v779, %v781
    %v783 = vrot.slane %v755, %v782
    %v784 = vcombine.high %v762, %v762
    %v785 = vcombine.high %v769, %v769
    %v786 = vcombine.high %v776, %v776
    %v787 = vcombine.high %v783, %v783
    %788 = vset.pattern.permute.xlu0 0
    %789 = vperm.xlu0 %788, %v33
    %v790 = vpop.permute.xlu0 %789
    %792 = vset.pattern.permute.xlu0 0
    %793 = vperm.xlu0 %792, %v35
    %v794 = vpop.permute.xlu0 %793
    %796 = vset.pattern.permute.xlu0 0
    %797 = vperm.xlu0 %796, %v37
    %v798 = vpop.permute.xlu0 %797
    %800 = vset.pattern.permute.xlu0 0
    %801 = vperm.xlu0 %800, %v39
    %v802 = vpop.permute.xlu0 %801
    %804 = vset.pattern.permute.xlu0 0
    %805 = vperm.xlu0 %804, %v41
    %v806 = vpop.permute.xlu0 %805
    %808 = vset.pattern.permute.xlu0 0
    %809 = vperm.xlu0 %808, %v43
    %v810 = vpop.permute.xlu0 %809
    %812 = vset.pattern.permute.xlu0 0
    %813 = vperm.xlu0 %812, %v45
    %v814 = vpop.permute.xlu0 %813
    %816 = vset.pattern.permute.xlu0 0
    %817 = vperm.xlu0 %816, %v47
    %v818 = vpop.permute.xlu0 %817
    %v820 = vlaneseq
    %v821 = vshrl.u32 %v820, 7
    %v822 = vsub.s32 0, %v821
    %v823 = vrot.slane %v712, %v822
    %v824 = vlaneseq
    %v825 = vshrl.u32 %v824, 7
    %v826 = vsub.s32 0, %v825
    %v827 = vrot.slane %v726, %v826
    %v828 = vlaneseq
    %v829 = vshrl.u32 %v828, 7
    %v830 = vsub.s32 0, %v829
    %v831 = vrot.slane %v734, %v830
    %v832 = vlaneseq
    %v833 = vshrl.u32 %v832, 7
    %v834 = vsub.s32 0, %v833
    %v835 = vrot.slane %v736, %v834
    %v836 = vlaneseq
    %v837 = vshrl.u32 %v836, 7
    %v838 = vsub.s32 0, %v837
    %v839 = vrot.slane %v719, %v838
    %v840 = vlaneseq
    %v841 = vshrl.u32 %v840, 7
    %v842 = vsub.s32 0, %v841
    %v843 = vrot.slane %v733, %v842
    %v844 = vlaneseq
    %v845 = vshrl.u32 %v844, 7
    %v846 = vsub.s32 0, %v845
    %v847 = vrot.slane %v735, %v846
    %v848 = vlaneseq
    %v849 = vshrl.u32 %v848, 7
    %v850 = vsub.s32 0, %v849
    %v851 = vrot.slane %v737, %v850
    %v860 = vmul.f32 %v790, %v823
    %v861 = vmul.f32 %v794, %v827
    %v862 = vmul.f32 %v798, %v831
    %v863 = vmul.f32 %v802, %v835
    %v864 = vmul.f32 %v806, %v839
    %v865 = vmul.f32 %v810, %v843
    %v866 = vmul.f32 %v814, %v847
    %v867 = vmul.f32 %v818, %v851
    %868 = vset.pattern.permute.xlu0 1
    %869 = vperm.xlu0 %868, %v33
    %v870 = vpop.permute.xlu0 %869
    %872 = vset.pattern.permute.xlu0 1
    %873 = vperm.xlu0 %872, %v35
    %v874 = vpop.permute.xlu0 %873
    %876 = vset.pattern.permute.xlu0 1
    %877 = vperm.xlu0 %876, %v37
    %v878 = vpop.permute.xlu0 %877
    %880 = vset.pattern.permute.xlu0 1
    %881 = vperm.xlu0 %880, %v39
    %v882 = vpop.permute.xlu0 %881
    %884 = vset.pattern.permute.xlu0 1
    %885 = vperm.xlu0 %884, %v41
    %v886 = vpop.permute.xlu0 %885
    %888 = vset.pattern.permute.xlu0 1
    %889 = vperm.xlu0 %888, %v43
    %v890 = vpop.permute.xlu0 %889
    %892 = vset.pattern.permute.xlu0 1
    %893 = vperm.xlu0 %892, %v45
    %v894 = vpop.permute.xlu0 %893
    %896 = vset.pattern.permute.xlu0 1
    %897 = vperm.xlu0 %896, %v47
    %v898 = vpop.permute.xlu0 %897
    %v900 = vmul.f32 %v870, %v823
    %v901 = vmul.f32 %v874, %v827
    %v902 = vmul.f32 %v878, %v831
    %v903 = vmul.f32 %v882, %v835
    %v904 = vmul.f32 %v886, %v839
    %v905 = vmul.f32 %v890, %v843
    %v906 = vmul.f32 %v894, %v847
    %v907 = vmul.f32 %v898, %v851
    %916 = vrot.lane.b32.xlu0 %v900, 64
    %v917 = vpop.permute.xlu0 %916
    %918 = vrot.lane.b32.xlu0 %v901, 64
    %v919 = vpop.permute.xlu0 %918
    %920 = vrot.lane.b32.xlu0 %v902, 64
    %v921 = vpop.permute.xlu0 %920
    %922 = vrot.lane.b32.xlu0 %v903, 64
    %v923 = vpop.permute.xlu0 %922
    %924 = vrot.lane.b32.xlu0 %v904, 64
    %v925 = vpop.permute.xlu0 %924
    %926 = vrot.lane.b32.xlu0 %v905, 64
    %v927 = vpop.permute.xlu0 %926
    %928 = vrot.lane.b32.xlu0 %v906, 64
    %v929 = vpop.permute.xlu0 %928
    %930 = vrot.lane.b32.xlu0 %v907, 64
    %v931 = vpop.permute.xlu0 %930
    %v940 = vadd.f32 %v860, %v917
    %v941 = vadd.f32 %v861, %v919
    %v942 = vadd.f32 %v862, %v921
    %v943 = vadd.f32 %v863, %v923
    %v944 = vadd.f32 %v864, %v925
    %v945 = vadd.f32 %v865, %v927
    %v946 = vadd.f32 %v866, %v929
    %v947 = vadd.f32 %v867, %v931
    %948 = vset.pattern.permute.xlu0 2
    %949 = vperm.xlu0 %948, %v33
    %v950 = vpop.permute.xlu0 %949
    %952 = vset.pattern.permute.xlu0 2
    %953 = vperm.xlu0 %952, %v35
    %v954 = vpop.permute.xlu0 %953
    %956 = vset.pattern.permute.xlu0 2
    %957 = vperm.xlu0 %956, %v37
    %v958 = vpop.permute.xlu0 %957
    %960 = vset.pattern.permute.xlu0 2
    %961 = vperm.xlu0 %960, %v39
    %v962 = vpop.permute.xlu0 %961
    %964 = vset.pattern.permute.xlu0 2
    %965 = vperm.xlu0 %964, %v41
    %v966 = vpop.permute.xlu0 %965
    %968 = vset.pattern.permute.xlu0 2
    %969 = vperm.xlu0 %968, %v43
    %v970 = vpop.permute.xlu0 %969
    %972 = vset.pattern.permute.xlu0 2
    %973 = vperm.xlu0 %972, %v45
    %v974 = vpop.permute.xlu0 %973
    %976 = vset.pattern.permute.xlu0 2
    %977 = vperm.xlu0 %976, %v47
    %v978 = vpop.permute.xlu0 %977
    %v980 = vlaneseq
    %v981 = vshrl.u32 %v980, 7
    %v982 = vsub.s32 0, %v981
    %v983 = vrot.slane %v762, %v982
    %v984 = vlaneseq
    %v985 = vshrl.u32 %v984, 7
    %v986 = vsub.s32 0, %v985
    %v987 = vrot.slane %v776, %v986
    %v988 = vlaneseq
    %v989 = vshrl.u32 %v988, 7
    %v990 = vsub.s32 0, %v989
    %v991 = vrot.slane %v784, %v990
    %v992 = vlaneseq
    %v993 = vshrl.u32 %v992, 7
    %v994 = vsub.s32 0, %v993
    %v995 = vrot.slane %v786, %v994
    %v996 = vlaneseq
    %v997 = vshrl.u32 %v996, 7
    %v998 = vsub.s32 0, %v997
    %v999 = vrot.slane %v769, %v998
    %v1000 = vlaneseq
    %v1001 = vshrl.u32 %v1000, 7
    %v1002 = vsub.s32 0, %v1001
    %v1003 = vrot.slane %v783, %v1002
    %v1004 = vlaneseq
    %v1005 = vshrl.u32 %v1004, 7
    %v1006 = vsub.s32 0, %v1005
    %v1007 = vrot.slane %v785, %v1006
    %v1008 = vlaneseq
    %v1009 = vshrl.u32 %v1008, 7
    %v1010 = vsub.s32 0, %v1009
    %v1011 = vrot.slane %v787, %v1010
    %v1020 = vmul.f32 %v950, %v983
    %v1021 = vmul.f32 %v954, %v987
    %v1022 = vmul.f32 %v958, %v991
    %v1023 = vmul.f32 %v962, %v995
    %v1024 = vmul.f32 %v966, %v999
    %v1025 = vmul.f32 %v970, %v1003
    %v1026 = vmul.f32 %v974, %v1007
    %v1027 = vmul.f32 %v978, %v1011
    %v1028 = vadd.f32 %v940, %v1020
    %v1029 = vadd.f32 %v941, %v1021
    %v1030 = vadd.f32 %v942, %v1022
    %v1031 = vadd.f32 %v943, %v1023
    %v1032 = vadd.f32 %v944, %v1024
    %v1033 = vadd.f32 %v945, %v1025
    %v1034 = vadd.f32 %v946, %v1026
    %v1035 = vadd.f32 %v947, %v1027
    %v1036 = vsel %vm492, %v1028, -inf
    %v1037 = vrot.slane %v1036, 4
    %v1038 = vmax.f32 %v1036, %v1037
    %v1039 = vrot.slane %v1038, 2
    %v1040 = vmax.f32 %v1038, %v1039
    %v1041 = vrot.slane %v1040, 1
    %v1042 = vmax.f32 %v1040, %v1041
    %v1043 = vsel %vm492, %v1029, -inf
    %v1044 = vrot.slane %v1043, 4
    %v1045 = vmax.f32 %v1043, %v1044
    %v1046 = vrot.slane %v1045, 2
    %v1047 = vmax.f32 %v1045, %v1046
    %v1048 = vrot.slane %v1047, 1
    %v1049 = vmax.f32 %v1047, %v1048
    %v1050 = vsel %vm492, %v1030, -inf
    %v1051 = vrot.slane %v1050, 4
    %v1052 = vmax.f32 %v1050, %v1051
    %v1053 = vrot.slane %v1052, 2
    %v1054 = vmax.f32 %v1052, %v1053
    %v1055 = vrot.slane %v1054, 1
    %v1056 = vmax.f32 %v1054, %v1055
    %v1057 = vsel %vm492, %v1031, -inf
    %v1058 = vrot.slane %v1057, 4
    %v1059 = vmax.f32 %v1057, %v1058
    %v1060 = vrot.slane %v1059, 2
    %v1061 = vmax.f32 %v1059, %v1060
    %v1062 = vrot.slane %v1061, 1
    %v1063 = vmax.f32 %v1061, %v1062
    %v1064 = vsel %vm492, %v1032, -inf
    %v1065 = vrot.slane %v1064, 4
    %v1066 = vmax.f32 %v1064, %v1065
    %v1067 = vrot.slane %v1066, 2
    %v1068 = vmax.f32 %v1066, %v1067
    %v1069 = vrot.slane %v1068, 1
    %v1070 = vmax.f32 %v1068, %v1069
    %v1071 = vsel %vm492, %v1033, -inf
    %v1072 = vrot.slane %v1071, 4
    %v1073 = vmax.f32 %v1071, %v1072
    %v1074 = vrot.slane %v1073, 2
    %v1075 = vmax.f32 %v1073, %v1074
    %v1076 = vrot.slane %v1075, 1
    %v1077 = vmax.f32 %v1075, %v1076
    %v1078 = vsel %vm492, %v1034, -inf
    %v1079 = vrot.slane %v1078, 4
    %v1080 = vmax.f32 %v1078, %v1079
    %v1081 = vrot.slane %v1080, 2
    %v1082 = vmax.f32 %v1080, %v1081
    %v1083 = vrot.slane %v1082, 1
    %v1084 = vmax.f32 %v1082, %v1083
    %v1085 = vsel %vm492, %v1035, -inf
    %v1086 = vrot.slane %v1085, 4
    %v1087 = vmax.f32 %v1085, %v1086
    %v1088 = vrot.slane %v1087, 2
    %v1089 = vmax.f32 %v1087, %v1088
    %v1090 = vrot.slane %v1089, 1
    %v1091 = vmax.f32 %v1089, %v1090
    %1092 = vset.pattern.permute.xlu0 0
    %1093 = vperm.xlu0 %1092, %v34
    %v1094 = vpop.permute.xlu0 %1093
    %1096 = vset.pattern.permute.xlu0 0
    %1097 = vperm.xlu0 %1096, %v36
    %v1098 = vpop.permute.xlu0 %1097
    %1100 = vset.pattern.permute.xlu0 0
    %1101 = vperm.xlu0 %1100, %v38
    %v1102 = vpop.permute.xlu0 %1101
    %1104 = vset.pattern.permute.xlu0 0
    %1105 = vperm.xlu0 %1104, %v40
    %v1106 = vpop.permute.xlu0 %1105
    %1108 = vset.pattern.permute.xlu0 0
    %1109 = vperm.xlu0 %1108, %v42
    %v1110 = vpop.permute.xlu0 %1109
    %1112 = vset.pattern.permute.xlu0 0
    %1113 = vperm.xlu0 %1112, %v44
    %v1114 = vpop.permute.xlu0 %1113
    %1116 = vset.pattern.permute.xlu0 0
    %1117 = vperm.xlu0 %1116, %v46
    %v1118 = vpop.permute.xlu0 %1117
    %1120 = vset.pattern.permute.xlu0 0
    %1121 = vperm.xlu0 %1120, %v48
    %v1122 = vpop.permute.xlu0 %1121
    %v1124 = vmul.f32 %v1094, %v823
    %v1125 = vmul.f32 %v1098, %v827
    %v1126 = vmul.f32 %v1102, %v831
    %v1127 = vmul.f32 %v1106, %v835
    %v1128 = vmul.f32 %v1110, %v839
    %v1129 = vmul.f32 %v1114, %v843
    %v1130 = vmul.f32 %v1118, %v847
    %v1131 = vmul.f32 %v1122, %v851
    %1132 = vset.pattern.permute.xlu0 1
    %1133 = vperm.xlu0 %1132, %v34
    %v1134 = vpop.permute.xlu0 %1133
    %1136 = vset.pattern.permute.xlu0 1
    %1137 = vperm.xlu0 %1136, %v36
    %v1138 = vpop.permute.xlu0 %1137
    %1140 = vset.pattern.permute.xlu0 1
    %1141 = vperm.xlu0 %1140, %v38
    %v1142 = vpop.permute.xlu0 %1141
    %1144 = vset.pattern.permute.xlu0 1
    %1145 = vperm.xlu0 %1144, %v40
    %v1146 = vpop.permute.xlu0 %1145
    %1148 = vset.pattern.permute.xlu0 1
    %1149 = vperm.xlu0 %1148, %v42
    %v1150 = vpop.permute.xlu0 %1149
    %1152 = vset.pattern.permute.xlu0 1
    %1153 = vperm.xlu0 %1152, %v44
    %v1154 = vpop.permute.xlu0 %1153
    %1156 = vset.pattern.permute.xlu0 1
    %1157 = vperm.xlu0 %1156, %v46
    %v1158 = vpop.permute.xlu0 %1157
    %1160 = vset.pattern.permute.xlu0 1
    %1161 = vperm.xlu0 %1160, %v48
    %v1162 = vpop.permute.xlu0 %1161
    %v1164 = vmul.f32 %v1134, %v823
    %v1165 = vmul.f32 %v1138, %v827
    %v1166 = vmul.f32 %v1142, %v831
    %v1167 = vmul.f32 %v1146, %v835
    %v1168 = vmul.f32 %v1150, %v839
    %v1169 = vmul.f32 %v1154, %v843
    %v1170 = vmul.f32 %v1158, %v847
    %v1171 = vmul.f32 %v1162, %v851
    %1180 = vrot.lane.b32.xlu0 %v1164, 64
    %v1181 = vpop.permute.xlu0 %1180
    %1182 = vrot.lane.b32.xlu0 %v1165, 64
    %v1183 = vpop.permute.xlu0 %1182
    %1184 = vrot.lane.b32.xlu0 %v1166, 64
    %v1185 = vpop.permute.xlu0 %1184
    %1186 = vrot.lane.b32.xlu0 %v1167, 64
    %v1187 = vpop.permute.xlu0 %1186
    %1188 = vrot.lane.b32.xlu0 %v1168, 64
    %v1189 = vpop.permute.xlu0 %1188
    %1190 = vrot.lane.b32.xlu0 %v1169, 64
    %v1191 = vpop.permute.xlu0 %1190
    %1192 = vrot.lane.b32.xlu0 %v1170, 64
    %v1193 = vpop.permute.xlu0 %1192
    %1194 = vrot.lane.b32.xlu0 %v1171, 64
    %v1195 = vpop.permute.xlu0 %1194
    %v1204 = vadd.f32 %v1124, %v1181
    %v1205 = vadd.f32 %v1125, %v1183
    %v1206 = vadd.f32 %v1126, %v1185
    %v1207 = vadd.f32 %v1127, %v1187
    %v1208 = vadd.f32 %v1128, %v1189
    %v1209 = vadd.f32 %v1129, %v1191
    %v1210 = vadd.f32 %v1130, %v1193
    %v1211 = vadd.f32 %v1131, %v1195
    %1212 = vset.pattern.permute.xlu0 2
    %1213 = vperm.xlu0 %1212, %v34
    %v1214 = vpop.permute.xlu0 %1213
    %1216 = vset.pattern.permute.xlu0 2
    %1217 = vperm.xlu0 %1216, %v36
    %v1218 = vpop.permute.xlu0 %1217
    %1220 = vset.pattern.permute.xlu0 2
    %1221 = vperm.xlu0 %1220, %v38
    %v1222 = vpop.permute.xlu0 %1221
    %1224 = vset.pattern.permute.xlu0 2
    %1225 = vperm.xlu0 %1224, %v40
    %v1226 = vpop.permute.xlu0 %1225
    %1228 = vset.pattern.permute.xlu0 2
    %1229 = vperm.xlu0 %1228, %v42
    %v1230 = vpop.permute.xlu0 %1229
    %1232 = vset.pattern.permute.xlu0 2
    %1233 = vperm.xlu0 %1232, %v44
    %v1234 = vpop.permute.xlu0 %1233
    %1236 = vset.pattern.permute.xlu0 2
    %1237 = vperm.xlu0 %1236, %v46
    %v1238 = vpop.permute.xlu0 %1237
    %1240 = vset.pattern.permute.xlu0 2
    %1241 = vperm.xlu0 %1240, %v48
    %v1242 = vpop.permute.xlu0 %1241
    %v1244 = vmul.f32 %v1214, %v983
    %v1245 = vmul.f32 %v1218, %v987
    %v1246 = vmul.f32 %v1222, %v991
    %v1247 = vmul.f32 %v1226, %v995
    %v1248 = vmul.f32 %v1230, %v999
    %v1249 = vmul.f32 %v1234, %v1003
    %v1250 = vmul.f32 %v1238, %v1007
    %v1251 = vmul.f32 %v1242, %v1011
    %v1252 = vadd.f32 %v1204, %v1244
    %v1253 = vadd.f32 %v1205, %v1245
    %v1254 = vadd.f32 %v1206, %v1246
    %v1255 = vadd.f32 %v1207, %v1247
    %v1256 = vadd.f32 %v1208, %v1248
    %v1257 = vadd.f32 %v1209, %v1249
    %v1258 = vadd.f32 %v1210, %v1250
    %v1259 = vadd.f32 %v1211, %v1251
    %v1260 = vsel %vm492, %v1252, -inf
    %v1261 = vrot.slane %v1260, 4
    %v1262 = vmax.f32 %v1260, %v1261
    %v1263 = vrot.slane %v1262, 2
    %v1264 = vmax.f32 %v1262, %v1263
    %v1265 = vrot.slane %v1264, 1
    %v1266 = vmax.f32 %v1264, %v1265
    %v1267 = vsel %vm492, %v1253, -inf
    %v1268 = vrot.slane %v1267, 4
    %v1269 = vmax.f32 %v1267, %v1268
    %v1270 = vrot.slane %v1269, 2
    %v1271 = vmax.f32 %v1269, %v1270
    %v1272 = vrot.slane %v1271, 1
    %v1273 = vmax.f32 %v1271, %v1272
    %v1274 = vsel %vm492, %v1254, -inf
    %v1275 = vrot.slane %v1274, 4
    %v1276 = vmax.f32 %v1274, %v1275
    %v1277 = vrot.slane %v1276, 2
    %v1278 = vmax.f32 %v1276, %v1277
    %v1279 = vrot.slane %v1278, 1
    %v1280 = vmax.f32 %v1278, %v1279
    %v1281 = vsel %vm492, %v1255, -inf
    %v1282 = vrot.slane %v1281, 4
    %v1283 = vmax.f32 %v1281, %v1282
    %v1284 = vrot.slane %v1283, 2
    %v1285 = vmax.f32 %v1283, %v1284
    %v1286 = vrot.slane %v1285, 1
    %v1287 = vmax.f32 %v1285, %v1286
    %v1288 = vsel %vm492, %v1256, -inf
    %v1289 = vrot.slane %v1288, 4
    %v1290 = vmax.f32 %v1288, %v1289
    %v1291 = vrot.slane %v1290, 2
    %v1292 = vmax.f32 %v1290, %v1291
    %v1293 = vrot.slane %v1292, 1
    %v1294 = vmax.f32 %v1292, %v1293
    %v1295 = vsel %vm492, %v1257, -inf
    %v1296 = vrot.slane %v1295, 4
    %v1297 = vmax.f32 %v1295, %v1296
    %v1298 = vrot.slane %v1297, 2
    %v1299 = vmax.f32 %v1297, %v1298
    %v1300 = vrot.slane %v1299, 1
    %v1301 = vmax.f32 %v1299, %v1300
    %v1302 = vsel %vm492, %v1258, -inf
    %v1303 = vrot.slane %v1302, 4
    %v1304 = vmax.f32 %v1302, %v1303
    %v1305 = vrot.slane %v1304, 2
    %v1306 = vmax.f32 %v1304, %v1305
    %v1307 = vrot.slane %v1306, 1
    %v1308 = vmax.f32 %v1306, %v1307
    %v1309 = vsel %vm492, %v1259, -inf
    %v1310 = vrot.slane %v1309, 4
    %v1311 = vmax.f32 %v1309, %v1310
    %v1312 = vrot.slane %v1311, 2
    %v1313 = vmax.f32 %v1311, %v1312
    %v1314 = vrot.slane %v1313, 1
    %v1315 = vmax.f32 %v1313, %v1314
    %v1316 = vmax.f32 %v1042, %v1266
    %v1317 = vmax.f32 %v1049, %v1273
    %v1318 = vmax.f32 %v1056, %v1280
    %v1319 = vmax.f32 %v1063, %v1287
    %v1320 = vmax.f32 %v1070, %v1294
    %v1321 = vmax.f32 %v1077, %v1301
    %v1322 = vmax.f32 %v1084, %v1308
    %v1323 = vmax.f32 %v1091, %v1315
    %v1324 = vld [vmem:[%s8] sm:$0x1]
    %v1326 = vlaneseq
    %v1327 = vshrl.u32 %v1326, 7
    %v1328 = vsub.s32 0, %v1327
    %v1329 = vrot.slane %v1324, %v1328
    %v1331 = vadd.f32 %v1316, %v1329
    %v1332 = vadd.f32 %v1317, %v1329
    %v1333 = vadd.f32 %v1318, %v1329
    %v1334 = vadd.f32 %v1319, %v1329
    %v1335 = vadd.f32 %v1320, %v1329
    %v1336 = vadd.f32 %v1321, %v1329
    %v1337 = vadd.f32 %v1322, %v1329
    %v1338 = vadd.f32 %v1323, %v1329
    %v1339 = vld [vmem:[%s1] sm:$0xff]
    %1341 = vset.pattern.permute.xlu0 0
    %1342 = vperm.xlu0 %1341, %v1339
    %v1343 = vpop.permute.xlu0 %1342
    %v1344 = vrot.slane %v1343, 1
    %v1345 = vrot.slane %v1343, 2
    %v1346 = vrot.slane %v1343, 3
    %v1347 = vrot.slane %v1343, 4
    %v1348 = vrot.slane %v1343, 5
    %v1349 = vrot.slane %v1343, 6
    %v1350 = vrot.slane %v1343, 7
    %v1359 = vmul.f32 %v1331, %v1343
    %v1360 = vmul.f32 %v1332, %v1344
    %v1361 = vmul.f32 %v1333, %v1345
    %v1362 = vmul.f32 %v1334, %v1346
    %v1363 = vmul.f32 %v1335, %v1347
    %v1364 = vmul.f32 %v1336, %v1348
    %v1365 = vmul.f32 %v1337, %v1349
    %v1366 = vmul.f32 %v1338, %v1350
    %v1375 = vrot.slane %v1360, 7
    %v1376 = vsel %vm601, %v1375, %v1359
    %v1377 = vrot.slane %v1361, 6
    %v1378 = vsel %vm603, %v1377, %v1376
    %v1379 = vrot.slane %v1362, 5
    %v1380 = vsel %vm605, %v1379, %v1378
    %v1381 = vrot.slane %v1363, 4
    %v1382 = vsel %vm607, %v1381, %v1380
    %v1383 = vrot.slane %v1364, 3
    %v1384 = vsel %vm609, %v1383, %v1382
    %v1385 = vrot.slane %v1365, 2
    %v1386 = vsel %vm611, %v1385, %v1384
    %v1387 = vrot.slane %v1366, 1
    %v1388 = vsel %vm613, %v1387, %v1386
    %1390 = vst.msk [vmem:[#allocation2] sm:$0xff] %vm492, %v1388
    // Predicated region
    $region38: #{tpu_custom_call.1} parent=1 // pred_check
      _
    $region39: #{tpu_custom_call.1} parent=1 // pred_check_branch
      %1392 = sbr.rel (0) target = $region41
    $region40: #{tpu_custom_call.1} parent=1 // pred_region
      %s1394 = ssub.s32 128, 128
      %1395 = vsyncadd [#allocation3], %s1394
      %s1397 = sshll.u32 [#allocation2], 4
      %s1398 = int_to_ptr.vmem [resolvable:$true] %s1397
      %1400 = dma.vmem_to_hbm [thread:$0]  %s1398, 128, %s9, [#allocation3]
    $region41: #{tpu_custom_call.1} parent=1 // pred_fallthru
      _
    // Predicated region
    $region42: #{tpu_custom_call.1} parent=1 // pred_check
      _
    $region43: #{tpu_custom_call.1} parent=1 // pred_check_branch
      %1402 = sbr.rel (0) target = $region45
    $region44: #{tpu_custom_call.1} parent=1 // pred_region
      %1403 = dma.done [#allocation3], 128
    $region45: #{tpu_custom_call.1} parent=1 // pred_fallthru
      _
    %1404 = vsyncpa [#allocation3], 1

</llo_original>
